<compile_context>
chip_gen: v6e
topology: v6e:2x2x1
jax: 0.10.0
libtpu: 0.0.40
codegen_flags: <defaults>
</compile_context>

<pallas_src>
import jax
import jax.numpy as jnp
from jax import lax
from jax.experimental import pallas as pl
from jax.experimental.pallas import tpu as pltpu


def _pick_tile(n, target):
    """Largest row-tile <= target dividing n (multiple of 8 unless full)."""
    if n <= target:
        return n
    t = target - (target % 8)
    while t >= 8:
        if n % t == 0:
            return t
        t -= 8
    return n


def _bcast_spec(a):
    nd = a.ndim
    return pl.BlockSpec(a.shape, lambda *args: (0,) * nd)


def res_conv1d_forward(x, params, pool=True, nlc_io=False,
                       compute_dtype=jnp.float32,
                       tile_l1=1024, tile_out=512):
    """Inference forward of Res_Conv1D.

    x: (B, C_in, L) PyTorch NCL (or (B, L, C_in) if nlc_io=True, which skips
    both layout transposes when blocks are stacked).
    Returns (B, planes, L_out) (or (B, L_out, planes) if nlc_io=True).
    """
    eps = 1e-5
    if nlc_io:
        B, L, C_in = x.shape
        x_nlc = x
    else:
        B, C_in, L = x.shape
        x_nlc = jnp.transpose(x, (0, 2, 1))                  # (B, L, C_in)
    assert L % 3 == 0, "sequence length must be divisible by 3 (stride-3 conv)"
    L1 = L // 3
    planes = params["conv1_w"].shape[0]

    s = 2 if pool else 1           # fused MaxPool1d(kernel=1, stride=2) step
    # TODO(synk): odd conv1 output lengths with pooling need a ragged last tile.
    assert L1 % s == 0, "pooled path requires an even conv1 output length"
    Lo = L1 // s                   # number of output time steps
    H = 2 // s                     # conv2 halo rows in the output domain

    # ---- fold BatchNorm (inference) and conv1 bias ------------------------
    s1 = params["bn1_gamma"] / jnp.sqrt(params["bn1_var"] + eps)
    t1 = params["bn1_beta"] - params["bn1_mean"] * s1
    s2 = params["bn2_gamma"] / jnp.sqrt(params["bn2_var"] + eps)
    t2 = params["bn2_beta"] - params["bn2_mean"] * s2 + params["conv1_b"] * s2

    K1 = 3 * C_in
    cd = compute_dtype
    s1t = jnp.tile(s1, 3)[None, :].astype(cd)                # (1, 3C)
    t1t = jnp.tile(t1, 3)[None, :].astype(cd)
    s2r = s2[None, :].astype(cd)                             # (1, P)
    t2r = t2[None, :].astype(cd)

    # conv weights rearranged so conv == matmul in the grouped layout
    w1mat = jnp.transpose(params["conv1_w"], (2, 1, 0)).reshape(K1, planes)
    w2t = jnp.transpose(params["conv2_w"], (2, 1, 0))        # (3, P, P) taps
    w2k = jnp.concatenate([w2t[0], w2t[1], w2t[2]], axis=0)  # (3P, P) stacked-K
    wdmat = jnp.transpose(params["down_w"], (2, 1, 0)).reshape(K1, planes)
    wse1t = params["se_w1"].T                                # (P, P//r)
    wse2t = params["se_w2"].T                                # (P//r, P)
    cb2 = params["conv2_b"][None, :]                         # (1, P)
    bd = params["down_b"][None, :]                           # (1, P)
    w1c, w2c, wdc = (a.astype(cd) for a in (w1mat, w2k, wdmat))

    # grouped views of the input (pure reshapes of the NLC tensor)
    xr = x_nlc.reshape(B, L1, K1).astype(cd)                 # pass 1: groups of 3
    x2 = x_nlc.reshape(B, Lo, s * K1).astype(cd)             # pass 2: groups of 3*s

    TL1 = _pick_tile(L1, tile_l1)
    TLo = _pick_tile(Lo, tile_out)
    nT1, nTo = L1 // TL1, Lo // TLo

    # ------------ pass 1: per-channel sums of h2 for the SE gate -----------
    def pass1_kernel(x_ref, s1_ref, t1_ref, w1_ref, s2_ref, t2_ref, sums_ref):
        t = pl.program_id(1)
        xv = x_ref[0]                                        # (TL1, 3C)
        h = jnp.maximum(xv * s1_ref[...] + t1_ref[...], 0.0)
        c1 = jnp.dot(h, w1_ref[...], preferred_element_type=jnp.float32)
        h2 = jnp.maximum(c1 * s2_ref[...] + t2_ref[...], 0.0)   # (TL1, P) f32
        row = t * TL1 + lax.broadcasted_iota(jnp.int32, (TL1, 1), 0)
        s_all = jnp.sum(h2, axis=0, keepdims=True)
        s_head = jnp.sum(jnp.where(row < 2, h2, 0.0), axis=0, keepdims=True)
        s_tail = jnp.sum(jnp.where(row >= L1 - 2, h2, 0.0), axis=0, keepdims=True)
        part = jnp.concatenate([s_all, s_head, s_tail], axis=0)[None]  # (1,3,P)

        @pl.when(t == 0)
        def _():
            sums_ref[...] = jnp.zeros_like(sums_ref)

        sums_ref[...] += part.astype(jnp.float32)

    sums = pl.pallas_call(
        pass1_kernel,
        out_shape=jax.ShapeDtypeStruct((B, 3, planes), jnp.float32),
        grid=(B, nT1),
        in_specs=[
            pl.BlockSpec((1, TL1, K1), lambda b, t: (b, t, 0)),
            _bcast_spec(s1t), _bcast_spec(t1t), _bcast_spec(w1c),
            _bcast_spec(s2r), _bcast_spec(t2r),
        ],
        out_specs=pl.BlockSpec((1, 3, planes), lambda b, t: (b, 0, 0)),
        compiler_params=pltpu.CompilerParams(
            dimension_semantics=("parallel", "arbitrary")),
    )(xr, s1t, t1t, w1c, s2r, t2r)

    # ---- SE gate + fused biases (tiny (B, planes) math, plain JAX) --------
    S, E, F = sums[:, 0], sums[:, 1], sums[:, 2]
    sum_c2 = S @ (w2t[0] + w2t[1] + w2t[2]) - F @ w2t[0] - E @ w2t[2]
    mean_c2 = sum_c2 / L1 + cb2                              # (B, P), incl. conv2 bias
    gate = jax.nn.sigmoid(jnp.maximum(mean_c2 @ wse1t, 0.0) @ wse2t)   # (B, P)
    bias_tot = gate * cb2 + bd                               # gate*cb2 + bd
    gate3 = gate.reshape(B, 1, planes).astype(jnp.float32)
    bias3 = bias_tot.reshape(B, 1, planes).astype(jnp.float32)

    # ---- explicit conv2 halo rows (H output-domain rows on each side) -----
    hal_idx = []
    for ti in range(nTo):
        o0 = ti * TLo
        for j in range(H):
            hal_idx.append(min(max(s * (o0 - H + j), 0), L1 - 1))
        for j in range(H):
            hal_idx.append(min(max(s * (o0 + TLo + j), 0), L1 - 1))
    halos = xr[:, jnp.array(hal_idx, dtype=jnp.int32), :].reshape(B, nTo, 2 * H, K1)

    # -------- pass 2: pooled conv2 + SE gate + residual + relu3 ------------
    def pass2_kernel(x_ref, hal_ref, gate_ref, bias_ref,
                     s1_ref, t1_ref, w1_ref, s2_ref, t2_ref, w2_ref, wd_ref,
                     o_ref):
        o0 = pl.program_id(1) * TLo
        xv = x_ref[0][:, :K1]                                # pooled rows (TLo, 3C)
        h = jnp.maximum(xv * s1_ref[...] + t1_ref[...], 0.0)
        ho = jnp.maximum(
            jnp.dot(h, w1_ref[...], preferred_element_type=jnp.float32)
            * s2_ref[...] + t2_ref[...], 0.0)                # (TLo, P) f32

        hx = hal_ref[0, 0]                                   # (2H, 3C) halo rows
        hh = jnp.maximum(hx * s1_ref[...] + t1_ref[...], 0.0)
        hho = jnp.maximum(
            jnp.dot(hh, w1_ref[...], preferred_element_type=jnp.float32)
            * s2_ref[...] + t2_ref[...], 0.0)                # (2H, P)

        # shifted rows for the conv2 taps; halo rows past the sequence
        # boundary act as conv2's zero padding.
        zrow = jnp.zeros((1, planes), jnp.float32)
        prev_rows = [jnp.where(o0 - H + j >= 0, hho[j:j + 1], zrow)
                     for j in range(H)]
        next_rows = [jnp.where(s * (o0 + TLo + j) <= L1 - 1,
                               hho[H + j:H + j + 1], zrow)
                     for j in range(H)]
        mid_lo = [ho[:TLo - H]] if TLo > H else []
        mid_hi = [ho[H:]] if TLo > H else []
        sp = jnp.concatenate(prev_rows + mid_lo, axis=0)     # rows t-2 (tap 0)
        sn = jnp.concatenate(mid_hi + next_rows, axis=0)     # rows t+2 (tap 2)

        # conv2 as a single stacked-K matmul on the MXU
        lhs = jnp.concatenate([sp, ho, sn], axis=1).astype(cd)   # (TLo, 3P)
        c2 = jnp.dot(lhs, w2_ref[...], preferred_element_type=jnp.float32)

        # downsample path on the identity input + SE gate + residual + relu3
        d = jnp.dot(xv, wd_ref[...], preferred_element_type=jnp.float32)
        o_ref[0] = jnp.maximum(gate_ref[0] * c2 + d + bias_ref[0], 0.0)

    out_nlc = pl.pallas_call(
        pass2_kernel,
        out_shape=jax.ShapeDtypeStruct((B, Lo, planes), jnp.float32),
        grid=(B, nTo),
        in_specs=[
            pl.BlockSpec((1, TLo, s * K1), lambda b, t: (b, t, 0)),
            pl.BlockSpec((1, 1, 2 * H, K1), lambda b, t: (b, t, 0, 0)),
            pl.BlockSpec((1, 1, planes), lambda b, t: (b, 0, 0)),
            pl.BlockSpec((1, 1, planes), lambda b, t: (b, 0, 0)),
            _bcast_spec(s1t), _bcast_spec(t1t), _bcast_spec(w1c),
            _bcast_spec(s2r), _bcast_spec(t2r), _bcast_spec(w2c),
            _bcast_spec(wdc),
        ],
        out_specs=pl.BlockSpec((1, TLo, planes), lambda b, t: (b, t, 0)),
        compiler_params=pltpu.CompilerParams(
            dimension_semantics=("parallel", "parallel")),
    )(x2, halos, gate3, bias3, s1t, t1t, w1c, s2r, t2r, w2c, wdc)

    if nlc_io:
        return out_nlc
    return jnp.transpose(out_nlc, (0, 2, 1))                 # back to NCL


def reference_forward(x, params, pool=True):
    """Pure-JAX reference mirroring the PyTorch module in eval mode."""
    eps = 1e-5
    s1 = params["bn1_gamma"] / jnp.sqrt(params["bn1_var"] + eps)
    t1 = params["bn1_beta"] - params["bn1_mean"] * s1
    s2 = params["bn2_gamma"] / jnp.sqrt(params["bn2_var"] + eps)
    t2 = params["bn2_beta"] - params["bn2_mean"] * s2
    dn = ("NCH", "OIH", "NCH")

    h = jnp.maximum(x * s1[None, :, None] + t1[None, :, None], 0.0)
    c1 = lax.conv_general_dilated(h, params["conv1_w"], (3,), "VALID",
                                  dimension_numbers=dn)
    c1 = c1 + params["conv1_b"][None, :, None]
    h2 = jnp.maximum(c1 * s2[None, :, None] + t2[None, :, None], 0.0)
    c2 = lax.conv_general_dilated(h2, params["conv2_w"], (1,), [(2, 2)],
                                  rhs_dilation=(2,), dimension_numbers=dn)
    c2 = c2 + params["conv2_b"][None, :, None]
    y = jnp.mean(c2, axis=2)
    g = jax.nn.sigmoid(jnp.maximum(y @ params["se_w1"].T, 0.0) @ params["se_w2"].T)
    c2 = c2 * g[:, :, None]
    d = lax.conv_general_dilated(x, params["down_w"], (3,), "VALID",
                                 dimension_numbers=dn)
    d = d + params["down_b"][None, :, None]
    out = jnp.maximum(c2 + d, 0.0)
    if pool:
        out = out[:, :, ::2]                                 # MaxPool1d(k=1, stride=2)
    return out


def init_params(key, inplanes, planes, reduction=16):
    ks = jax.random.split(key, 16)

    def nrm(k, shape, scale=0.1):
        return scale * jax.random.normal(k, shape, dtype=jnp.float32)

    return dict(
        bn1_gamma=1.0 + nrm(ks[0], (inplanes,)),
        bn1_beta=nrm(ks[1], (inplanes,)),
        bn1_mean=nrm(ks[2], (inplanes,)),
        bn1_var=1.0 + 0.1 * jax.random.uniform(ks[3], (inplanes,), dtype=jnp.float32),
        conv1_w=nrm(ks[4], (planes, inplanes, 3)),
        conv1_b=nrm(ks[5], (planes,)),
        bn2_gamma=1.0 + nrm(ks[6], (planes,)),
        bn2_beta=nrm(ks[7], (planes,)),
        bn2_mean=nrm(ks[8], (planes,)),
        bn2_var=1.0 + 0.1 * jax.random.uniform(ks[9], (planes,), dtype=jnp.float32),
        conv2_w=nrm(ks[10], (planes, planes, 3)),
        conv2_b=nrm(ks[11], (planes,)),
        se_w1=nrm(ks[12], (planes // reduction, planes)),
        se_w2=nrm(ks[13], (planes, planes // reduction)),
        down_w=nrm(ks[14], (planes, inplanes, 3)),
        down_b=nrm(ks[15], (planes,)),
    )


if __name__ == "__main__":
    B, inplanes, planes, L = 2, 16, 32, 24     # small demo shapes (planes//16 >= 1)
    key = jax.random.PRNGKey(0)
    kx, kp = jax.random.split(key)
    x = jax.random.normal(kx, (B, inplanes, L), dtype=jnp.float32)   # PyTorch NCL
    params = init_params(kp, inplanes, planes)

    fwd = jax.jit(res_conv1d_forward, static_argnames=("pool",))
    for pool in (True, False):
        out = jax.block_until_ready(fwd(x, params, pool=pool))
        l_out = (L // 3) // 2 if pool else (L // 3)
        assert out.shape == (B, planes, l_out), out.shape
        ref = reference_forward(x, params, pool=pool)
        err = float(jnp.max(jnp.abs(out - ref)))
        assert err < 1e-3, f"pool={pool}: max |kernel - reference| = {err}"
    print("KERNEL_OK")
</pallas_src>

<mosaic_0001>
module attributes {stable_mosaic.version = 11 : i64} {
  func.func @pass1_kernel(%arg0: i32, %arg1: i32, %arg2: memref<1x8x48xf32, #tpu.memory_space<vmem>>, %arg3: memref<1x48xf32, #tpu.memory_space<vmem>>, %arg4: memref<1x48xf32, #tpu.memory_space<vmem>>, %arg5: memref<48x32xf32, #tpu.memory_space<vmem>>, %arg6: memref<1x32xf32, #tpu.memory_space<vmem>>, %arg7: memref<1x32xf32, #tpu.memory_space<vmem>>, %arg8: memref<1x3x32xf32, #tpu.memory_space<vmem>>) attributes {dimension_semantics = [#tpu.dimension_semantics<parallel>, #tpu.dimension_semantics<arbitrary>], iteration_bounds = array<i64: 2, 1>, scalar_prefetch = 0 : i64, scratch_operands = 0 : i64, tpu.core_type = #tpu.core_type<tc>, window_params = [{transform_indices = @transform_0, window_bounds = array<i64: 1, 8, 48>}, {pipeline_mode = #tpu.pipeline_mode<synchronous>, transform_indices = @transform_1, window_bounds = array<i64: 1, 48>}, {pipeline_mode = #tpu.pipeline_mode<synchronous>, transform_indices = @transform_2, window_bounds = array<i64: 1, 48>}, {pipeline_mode = #tpu.pipeline_mode<synchronous>, transform_indices = @transform_3, window_bounds = array<i64: 48, 32>}, {pipeline_mode = #tpu.pipeline_mode<synchronous>, transform_indices = @transform_4, window_bounds = array<i64: 1, 32>}, {pipeline_mode = #tpu.pipeline_mode<synchronous>, transform_indices = @transform_5, window_bounds = array<i64: 1, 32>}, {transform_indices = @transform_6, window_bounds = array<i64: 1, 3, 32>}]} {
    %c0 = arith.constant 0 : index
    %c0_0 = arith.constant 0 : index
    %c0_1 = arith.constant 0 : index
    %0 = vector.load %arg2[%c0, %c0_0, %c0_1] : memref<1x8x48xf32, #tpu.memory_space<vmem>>, vector<1x8x48xf32>
    %1 = vector.shape_cast %0 : vector<1x8x48xf32> to vector<8x48xf32>
    %c0_2 = arith.constant 0 : index
    %c0_3 = arith.constant 0 : index
    %2 = vector.load %arg3[%c0_2, %c0_3] : memref<1x48xf32, #tpu.memory_space<vmem>>, vector<1x48xf32>
    %3 = vector.broadcast %2 : vector<1x48xf32> to vector<8x48xf32>
    %4 = arith.mulf %1, %3 : vector<8x48xf32>
    %c0_4 = arith.constant 0 : index
    %c0_5 = arith.constant 0 : index
    %5 = vector.load %arg4[%c0_4, %c0_5] : memref<1x48xf32, #tpu.memory_space<vmem>>, vector<1x48xf32>
    %6 = vector.broadcast %5 : vector<1x48xf32> to vector<8x48xf32>
    %7 = arith.addf %4, %6 : vector<8x48xf32>
    %cst = arith.constant 0.000000e+00 : f32
    %8 = vector.broadcast %cst : f32 to vector<8x48xf32>
    %9 = arith.maximumf %7, %8 : vector<8x48xf32>
    %c0_6 = arith.constant 0 : index
    %c0_7 = arith.constant 0 : index
    %10 = vector.load %arg5[%c0_6, %c0_7] : memref<48x32xf32, #tpu.memory_space<vmem>>, vector<48x32xf32>
    %cst_8 = arith.constant dense<0.000000e+00> : vector<8x32xf32>
    %11 = tpu.matmul %9, %10, %cst_8 {dimension_numbers = #tpu.dot_dimension_numbers<[1], [0], [0], [1], [0, 0, 1, 1], [], []>} : vector<8x48xf32>, vector<48x32xf32>, vector<8x32xf32> -> vector<8x32xf32>
    %c0_9 = arith.constant 0 : index
    %c0_10 = arith.constant 0 : index
    %12 = vector.load %arg6[%c0_9, %c0_10] : memref<1x32xf32, #tpu.memory_space<vmem>>, vector<1x32xf32>
    %13 = vector.broadcast %12 : vector<1x32xf32> to vector<8x32xf32>
    %14 = arith.mulf %11, %13 : vector<8x32xf32>
    %c0_11 = arith.constant 0 : index
    %c0_12 = arith.constant 0 : index
    %15 = vector.load %arg7[%c0_11, %c0_12] : memref<1x32xf32, #tpu.memory_space<vmem>>, vector<1x32xf32>
    %16 = vector.broadcast %15 : vector<1x32xf32> to vector<8x32xf32>
    %17 = arith.addf %14, %16 : vector<8x32xf32>
    %cst_13 = arith.constant 0.000000e+00 : f32
    %18 = vector.broadcast %cst_13 : f32 to vector<8x32xf32>
    %19 = arith.maximumf %17, %18 : vector<8x32xf32>
    %c8_i32 = arith.constant 8 : i32
    %20 = arith.muli %arg1, %c8_i32 : i32
    %21 = tpu.iota {dimensions = array<i32: 0>} : vector<8x1xi32>
    %22 = vector.broadcast %20 : i32 to vector<8x1xi32>
    %23 = arith.addi %22, %21 : vector<8x1xi32>
    %cst_14 = arith.constant dense<0.000000e+00> : vector<32xf32>
    %24 = vector.multi_reduction <add>, %19, %cst_14 [0] : vector<8x32xf32> to vector<32xf32>
    %25 = vector.shape_cast %24 : vector<32xf32> to vector<1x32xf32>
    %c2_i32 = arith.constant 2 : i32
    %26 = vector.broadcast %c2_i32 : i32 to vector<8x1xi32>
    %27 = arith.cmpi slt, %23, %26 : vector<8x1xi32>
    %cst_15 = arith.constant 0.000000e+00 : f32
    %28 = vector.shape_cast %27 : vector<8x1xi1> to vector<8x1xi1>
    %29 = vector.broadcast %28 : vector<8x1xi1> to vector<8x32xi1>
    %30 = vector.broadcast %cst_15 : f32 to vector<8x32xf32>
    %31 = arith.select %29, %19, %30 : vector<8x32xi1>, vector<8x32xf32>
    %cst_16 = arith.constant dense<0.000000e+00> : vector<32xf32>
    %32 = vector.multi_reduction <add>, %31, %cst_16 [0] : vector<8x32xf32> to vector<32xf32>
    %33 = vector.shape_cast %32 : vector<32xf32> to vector<1x32xf32>
    %c6_i32 = arith.constant 6 : i32
    %34 = vector.broadcast %c6_i32 : i32 to vector<8x1xi32>
    %35 = arith.cmpi sge, %23, %34 : vector<8x1xi32>
    %cst_17 = arith.constant 0.000000e+00 : f32
    %36 = vector.shape_cast %35 : vector<8x1xi1> to vector<8x1xi1>
    %37 = vector.broadcast %36 : vector<8x1xi1> to vector<8x32xi1>
    %38 = vector.broadcast %cst_17 : f32 to vector<8x32xf32>
    %39 = arith.select %37, %19, %38 : vector<8x32xi1>, vector<8x32xf32>
    %cst_18 = arith.constant dense<0.000000e+00> : vector<32xf32>
    %40 = vector.multi_reduction <add>, %39, %cst_18 [0] : vector<8x32xf32> to vector<32xf32>
    %41 = vector.shape_cast %40 : vector<32xf32> to vector<1x32xf32>
    %42 = tpu.concatenate %25, %33, %41 in 0 : vector<1x32xf32>, vector<1x32xf32>, vector<1x32xf32> -> vector<3x32xf32>
    %43 = vector.shape_cast %42 : vector<3x32xf32> to vector<1x3x32xf32>
    %c0_i32 = arith.constant 0 : i32
    %44 = arith.cmpi eq, %arg1, %c0_i32 : i32
    %45 = arith.extui %44 : i1 to i32
    %c0_i32_19 = arith.constant 0 : i32
    %46 = arith.cmpi ne, %45, %c0_i32_19 : i32
    scf.if %46 {
      %cst_26 = arith.constant 0.000000e+00 : f32
      %50 = vector.broadcast %cst_26 : f32 to vector<1x3x32xf32>
      %c0_27 = arith.constant 0 : index
      %c0_28 = arith.constant 0 : index
      %c0_29 = arith.constant 0 : index
      %51 = vector.load %arg8[%c0_27, %c0_28, %c0_29] : memref<1x3x32xf32, #tpu.memory_space<vmem>>, vector<1x3x32xf32>
      tpu.vector_store %arg8[%c0_27, %c0_28, %c0_29], %50 {strides = array<i32>} : memref<1x3x32xf32, #tpu.memory_space<vmem>>, vector<1x3x32xf32>,
    } else {
    }
    %c0_20 = arith.constant 0 : index
    %c0_21 = arith.constant 0 : index
    %c0_22 = arith.constant 0 : index
    %47 = vector.load %arg8[%c0_20, %c0_21, %c0_22] : memref<1x3x32xf32, #tpu.memory_space<vmem>>, vector<1x3x32xf32>
    %48 = arith.addf %47, %43 : vector<1x3x32xf32>
    %c0_23 = arith.constant 0 : index
    %c0_24 = arith.constant 0 : index
    %c0_25 = arith.constant 0 : index
    %49 = vector.load %arg8[%c0_23, %c0_24, %c0_25] : memref<1x3x32xf32, #tpu.memory_space<vmem>>, vector<1x3x32xf32>
    tpu.vector_store %arg8[%c0_23, %c0_24, %c0_25], %48 {strides = array<i32>} : memref<1x3x32xf32, #tpu.memory_space<vmem>>, vector<1x3x32xf32>,
    return
  }
  func.func @transform_0(%arg0: i32, %arg1: i32) -> (i32, i32, i32) {
    %c0_i32 = arith.constant 0 : i32
    %c0_i32_0 = arith.constant 0 : i32
    return %arg0, %arg1, %c0_i32 : i32, i32, i32
  }
  func.func @transform_1(%arg0: i32, %arg1: i32) -> (i32, i32) {
    %c0_i32 = arith.constant 0 : i32
    %c0_i32_0 = arith.constant 0 : i32
    %c0_i32_1 = arith.constant 0 : i32
    return %c0_i32, %c0_i32_0 : i32, i32
  }
  func.func @transform_2(%arg0: i32, %arg1: i32) -> (i32, i32) {
    %c0_i32 = arith.constant 0 : i32
    %c0_i32_0 = arith.constant 0 : i32
    %c0_i32_1 = arith.constant 0 : i32
    return %c0_i32, %c0_i32_0 : i32, i32
  }
  func.func @transform_3(%arg0: i32, %arg1: i32) -> (i32, i32) {
    %c0_i32 = arith.constant 0 : i32
    %c0_i32_0 = arith.constant 0 : i32
    %c0_i32_1 = arith.constant 0 : i32
    return %c0_i32, %c0_i32_0 : i32, i32
  }
  func.func @transform_4(%arg0: i32, %arg1: i32) -> (i32, i32) {
    %c0_i32 = arith.constant 0 : i32
    %c0_i32_0 = arith.constant 0 : i32
    %c0_i32_1 = arith.constant 0 : i32
    return %c0_i32, %c0_i32_0 : i32, i32
  }
  func.func @transform_5(%arg0: i32, %arg1: i32) -> (i32, i32) {
    %c0_i32 = arith.constant 0 : i32
    %c0_i32_0 = arith.constant 0 : i32
    %c0_i32_1 = arith.constant 0 : i32
    return %c0_i32, %c0_i32_0 : i32, i32
  }
  func.func @transform_6(%arg0: i32, %arg1: i32) -> (i32, i32, i32) {
    %c0_i32 = arith.constant 0 : i32
    %c0_i32_0 = arith.constant 0 : i32
    %c0_i32_1 = arith.constant 0 : i32
    return %arg0, %c0_i32, %c0_i32_0 : i32, i32, i32
  }
}

module attributes {stable_mosaic.version = 11 : i64} {
  func.func @pass2_kernel(%arg0: i32, %arg1: i32, %arg2: memref<1x4x96xf32, #tpu.memory_space<vmem>>, %arg3: memref<1x1x2x48xf32, #tpu.memory_space<vmem>>, %arg4: memref<1x1x32xf32, #tpu.memory_space<vmem>>, %arg5: memref<1x1x32xf32, #tpu.memory_space<vmem>>, %arg6: memref<1x48xf32, #tpu.memory_space<vmem>>, %arg7: memref<1x48xf32, #tpu.memory_space<vmem>>, %arg8: memref<48x32xf32, #tpu.memory_space<vmem>>, %arg9: memref<1x32xf32, #tpu.memory_space<vmem>>, %arg10: memref<1x32xf32, #tpu.memory_space<vmem>>, %arg11: memref<96x32xf32, #tpu.memory_space<vmem>>, %arg12: memref<48x32xf32, #tpu.memory_space<vmem>>, %arg13: memref<1x4x32xf32, #tpu.memory_space<vmem>>) attributes {dimension_semantics = [#tpu.dimension_semantics<parallel>, #tpu.dimension_semantics<parallel>], iteration_bounds = array<i64: 2, 1>, scalar_prefetch = 0 : i64, scratch_operands = 0 : i64, tpu.core_type = #tpu.core_type<tc>, window_params = [{transform_indices = @transform_0, window_bounds = array<i64: 1, 4, 96>}, {transform_indices = @transform_1, window_bounds = array<i64: 1, 1, 2, 48>}, {transform_indices = @transform_2, window_bounds = array<i64: 1, 1, 32>}, {transform_indices = @transform_3, window_bounds = array<i64: 1, 1, 32>}, {pipeline_mode = #tpu.pipeline_mode<synchronous>, transform_indices = @transform_4, window_bounds = array<i64: 1, 48>}, {pipeline_mode = #tpu.pipeline_mode<synchronous>, transform_indices = @transform_5, window_bounds = array<i64: 1, 48>}, {pipeline_mode = #tpu.pipeline_mode<synchronous>, transform_indices = @transform_6, window_bounds = array<i64: 48, 32>}, {pipeline_mode = #tpu.pipeline_mode<synchronous>, transform_indices = @transform_7, window_bounds = array<i64: 1, 32>}, {pipeline_mode = #tpu.pipeline_mode<synchronous>, transform_indices = @transform_8, window_bounds = array<i64: 1, 32>}, {pipeline_mode = #tpu.pipeline_mode<synchronous>, transform_indices = @transform_9, window_bounds = array<i64: 96, 32>}, {pipeline_mode = #tpu.pipeline_mode<synchronous>, transform_indices = @transform_10, window_bounds = array<i64: 48, 32>}, {transform_indices = @transform_11, window_bounds = array<i64: 1, 4, 32>}]} {
    %c4_i32 = arith.constant 4 : i32
    %0 = arith.muli %arg1, %c4_i32 : i32
    %c0 = arith.constant 0 : index
    %c0_0 = arith.constant 0 : index
    %c0_1 = arith.constant 0 : index
    %1 = vector.load %arg2[%c0, %c0_0, %c0_1] : memref<1x4x96xf32, #tpu.memory_space<vmem>>, vector<1x4x96xf32>
    %2 = vector.shape_cast %1 : vector<1x4x96xf32> to vector<4x96xf32>
    %3 = vector.extract_strided_slice %2 {offsets = [0, 0], sizes = [4, 48], strides = [1, 1]} : vector<4x96xf32> to vector<4x48xf32>
    %c0_2 = arith.constant 0 : index
    %c0_3 = arith.constant 0 : index
    %4 = vector.load %arg6[%c0_2, %c0_3] : memref<1x48xf32, #tpu.memory_space<vmem>>, vector<1x48xf32>
    %5 = vector.broadcast %4 : vector<1x48xf32> to vector<4x48xf32>
    %6 = arith.mulf %3, %5 : vector<4x48xf32>
    %c0_4 = arith.constant 0 : index
    %c0_5 = arith.constant 0 : index
    %7 = vector.load %arg7[%c0_4, %c0_5] : memref<1x48xf32, #tpu.memory_space<vmem>>, vector<1x48xf32>
    %8 = vector.broadcast %7 : vector<1x48xf32> to vector<4x48xf32>
    %9 = arith.addf %6, %8 : vector<4x48xf32>
    %cst = arith.constant 0.000000e+00 : f32
    %10 = vector.broadcast %cst : f32 to vector<4x48xf32>
    %11 = arith.maximumf %9, %10 : vector<4x48xf32>
    %c0_6 = arith.constant 0 : index
    %c0_7 = arith.constant 0 : index
    %12 = vector.load %arg8[%c0_6, %c0_7] : memref<48x32xf32, #tpu.memory_space<vmem>>, vector<48x32xf32>
    %cst_8 = arith.constant dense<0.000000e+00> : vector<4x32xf32>
    %13 = tpu.matmul %11, %12, %cst_8 {dimension_numbers = #tpu.dot_dimension_numbers<[1], [0], [0], [1], [0, 0, 1, 1], [], []>} : vector<4x48xf32>, vector<48x32xf32>, vector<4x32xf32> -> vector<4x32xf32>
    %c0_9 = arith.constant 0 : index
    %c0_10 = arith.constant 0 : index
    %14 = vector.load %arg9[%c0_9, %c0_10] : memref<1x32xf32, #tpu.memory_space<vmem>>, vector<1x32xf32>
    %15 = vector.broadcast %14 : vector<1x32xf32> to vector<4x32xf32>
    %16 = arith.mulf %13, %15 : vector<4x32xf32>
    %c0_11 = arith.constant 0 : index
    %c0_12 = arith.constant 0 : index
    %17 = vector.load %arg10[%c0_11, %c0_12] : memref<1x32xf32, #tpu.memory_space<vmem>>, vector<1x32xf32>
    %18 = vector.broadcast %17 : vector<1x32xf32> to vector<4x32xf32>
    %19 = arith.addf %16, %18 : vector<4x32xf32>
    %cst_13 = arith.constant 0.000000e+00 : f32
    %20 = vector.broadcast %cst_13 : f32 to vector<4x32xf32>
    %21 = arith.maximumf %19, %20 : vector<4x32xf32>
    %c0_14 = arith.constant 0 : index
    %c0_15 = arith.constant 0 : index
    %c0_16 = arith.constant 0 : index
    %c0_17 = arith.constant 0 : index
    %22 = vector.load %arg3[%c0_14, %c0_15, %c0_16, %c0_17] : memref<1x1x2x48xf32, #tpu.memory_space<vmem>>, vector<1x1x2x48xf32>
    %23 = vector.shape_cast %22 : vector<1x1x2x48xf32> to vector<2x48xf32>
    %c0_18 = arith.constant 0 : index
    %c0_19 = arith.constant 0 : index
    %24 = vector.load %arg6[%c0_18, %c0_19] : memref<1x48xf32, #tpu.memory_space<vmem>>, vector<1x48xf32>
    %25 = vector.broadcast %24 : vector<1x48xf32> to vector<2x48xf32>
    %26 = arith.mulf %23, %25 : vector<2x48xf32>
    %c0_20 = arith.constant 0 : index
    %c0_21 = arith.constant 0 : index
    %27 = vector.load %arg7[%c0_20, %c0_21] : memref<1x48xf32, #tpu.memory_space<vmem>>, vector<1x48xf32>
    %28 = vector.broadcast %27 : vector<1x48xf32> to vector<2x48xf32>
    %29 = arith.addf %26, %28 : vector<2x48xf32>
    %cst_22 = arith.constant 0.000000e+00 : f32
    %30 = vector.broadcast %cst_22 : f32 to vector<2x48xf32>
    %31 = arith.maximumf %29, %30 : vector<2x48xf32>
    %c0_23 = arith.constant 0 : index
    %c0_24 = arith.constant 0 : index
    %32 = vector.load %arg8[%c0_23, %c0_24] : memref<48x32xf32, #tpu.memory_space<vmem>>, vector<48x32xf32>
    %cst_25 = arith.constant dense<0.000000e+00> : vector<2x32xf32>
    %33 = tpu.matmul %31, %32, %cst_25 {dimension_numbers = #tpu.dot_dimension_numbers<[1], [0], [0], [1], [0, 0, 1, 1], [], []>} : vector<2x48xf32>, vector<48x32xf32>, vector<2x32xf32> -> vector<2x32xf32>
    %c0_26 = arith.constant 0 : index
    %c0_27 = arith.constant 0 : index
    %34 = vector.load %arg9[%c0_26, %c0_27] : memref<1x32xf32, #tpu.memory_space<vmem>>, vector<1x32xf32>
    %35 = vector.broadcast %34 : vector<1x32xf32> to vector<2x32xf32>
    %36 = arith.mulf %33, %35 : vector<2x32xf32>
    %c0_28 = arith.constant 0 : index
    %c0_29 = arith.constant 0 : index
    %37 = vector.load %arg10[%c0_28, %c0_29] : memref<1x32xf32, #tpu.memory_space<vmem>>, vector<1x32xf32>
    %38 = vector.broadcast %37 : vector<1x32xf32> to vector<2x32xf32>
    %39 = arith.addf %36, %38 : vector<2x32xf32>
    %cst_30 = arith.constant 0.000000e+00 : f32
    %40 = vector.broadcast %cst_30 : f32 to vector<2x32xf32>
    %41 = arith.maximumf %39, %40 : vector<2x32xf32>
    %cst_31 = arith.constant 0.000000e+00 : f32
    %42 = vector.broadcast %cst_31 : f32 to vector<1x32xf32>
    %c1_i32 = arith.constant 1 : i32
    %43 = arith.subi %0, %c1_i32 : i32
    %c0_i32 = arith.constant 0 : i32
    %44 = arith.addi %43, %c0_i32 : i32
    %c0_i32_32 = arith.constant 0 : i32
    %45 = arith.cmpi sge, %44, %c0_i32_32 : i32
    %46 = vector.extract_strided_slice %41 {offsets = [0, 0], sizes = [1, 32], strides = [1, 1]} : vector<2x32xf32> to vector<1x32xf32>
    %47 = arith.select %45, %46, %42 : vector<1x32xf32>
    %c4_i32_33 = arith.constant 4 : i32
    %48 = arith.addi %0, %c4_i32_33 : i32
    %c0_i32_34 = arith.constant 0 : i32
    %49 = arith.addi %48, %c0_i32_34 : i32
    %c2_i32 = arith.constant 2 : i32
    %50 = arith.muli %c2_i32, %49 : i32
    %c7_i32 = arith.constant 7 : i32
    %51 = arith.cmpi sle, %50, %c7_i32 : i32
    %52 = vector.extract_strided_slice %41 {offsets = [1, 0], sizes = [1, 32], strides = [1, 1]} : vector<2x32xf32> to vector<1x32xf32>
    %53 = arith.select %51, %52, %42 : vector<1x32xf32>
    %54 = vector.extract_strided_slice %21 {offsets = [0, 0], sizes = [3, 32], strides = [1, 1]} : vector<4x32xf32> to vector<3x32xf32>
    %55 = vector.extract_strided_slice %21 {offsets = [1, 0], sizes = [3, 32], strides = [1, 1]} : vector<4x32xf32> to vector<3x32xf32>
    %56 = tpu.concatenate %47, %54 in 0 : vector<1x32xf32>, vector<3x32xf32> -> vector<4x32xf32>
    %57 = tpu.concatenate %55, %53 in 0 : vector<3x32xf32>, vector<1x32xf32> -> vector<4x32xf32>
    %58 = tpu.concatenate %56, %21, %57 in 1 : vector<4x32xf32>, vector<4x32xf32>, vector<4x32xf32> -> vector<4x96xf32>
    %c0_35 = arith.constant 0 : index
    %c0_36 = arith.constant 0 : index
    %59 = vector.load %arg11[%c0_35, %c0_36] : memref<96x32xf32, #tpu.memory_space<vmem>>, vector<96x32xf32>
    %cst_37 = arith.constant dense<0.000000e+00> : vector<4x32xf32>
    %60 = tpu.matmul %58, %59, %cst_37 {dimension_numbers = #tpu.dot_dimension_numbers<[1], [0], [0], [1], [0, 0, 1, 1], [], []>} : vector<4x96xf32>, vector<96x32xf32>, vector<4x32xf32> -> vector<4x32xf32>
    %c0_38 = arith.constant 0 : index
    %c0_39 = arith.constant 0 : index
    %61 = vector.load %arg12[%c0_38, %c0_39] : memref<48x32xf32, #tpu.memory_space<vmem>>, vector<48x32xf32>
    %cst_40 = arith.constant dense<0.000000e+00> : vector<4x32xf32>
    %62 = tpu.matmul %3, %61, %cst_40 {dimension_numbers = #tpu.dot_dimension_numbers<[1], [0], [0], [1], [0, 0, 1, 1], [], []>} : vector<4x48xf32>, vector<48x32xf32>, vector<4x32xf32> -> vector<4x32xf32>
    %c0_41 = arith.constant 0 : index
    %c0_42 = arith.constant 0 : index
    %c0_43 = arith.constant 0 : index
    %63 = vector.load %arg4[%c0_41, %c0_42, %c0_43] : memref<1x1x32xf32, #tpu.memory_space<vmem>>, vector<1x1x32xf32>
    %64 = vector.shape_cast %63 : vector<1x1x32xf32> to vector<1x32xf32>
    %65 = vector.broadcast %64 : vector<1x32xf32> to vector<4x32xf32>
    %66 = arith.mulf %65, %60 : vector<4x32xf32>
    %67 = arith.addf %66, %62 : vector<4x32xf32>
    %c0_44 = arith.constant 0 : index
    %c0_45 = arith.constant 0 : index
    %c0_46 = arith.constant 0 : index
    %68 = vector.load %arg5[%c0_44, %c0_45, %c0_46] : memref<1x1x32xf32, #tpu.memory_space<vmem>>, vector<1x1x32xf32>
    %69 = vector.shape_cast %68 : vector<1x1x32xf32> to vector<1x32xf32>
    %70 = vector.broadcast %69 : vector<1x32xf32> to vector<4x32xf32>
    %71 = arith.addf %67, %70 : vector<4x32xf32>
    %cst_47 = arith.constant 0.000000e+00 : f32
    %72 = vector.broadcast %cst_47 : f32 to vector<4x32xf32>
    %73 = arith.maximumf %71, %72 : vector<4x32xf32>
    %c0_48 = arith.constant 0 : index
    %c0_49 = arith.constant 0 : index
    %c0_50 = arith.constant 0 : index
    %74 = vector.load %arg13[%c0_48, %c0_49, %c0_50] : memref<1x4x32xf32, #tpu.memory_space<vmem>>, vector<1x4x32xf32>
    %75 = vector.shape_cast %74 : vector<1x4x32xf32> to vector<4x32xf32>
    %76 = vector.shape_cast %73 : vector<4x32xf32> to vector<1x4x32xf32>
    tpu.vector_store %arg13[%c0_48, %c0_49, %c0_50], %76 {strides = array<i32>} : memref<1x4x32xf32, #tpu.memory_space<vmem>>, vector<1x4x32xf32>,
    return
  }
  func.func @transform_0(%arg0: i32, %arg1: i32) -> (i32, i32, i32) {
    %c0_i32 = arith.constant 0 : i32
    %c0_i32_0 = arith.constant 0 : i32
    return %arg0, %arg1, %c0_i32 : i32, i32, i32
  }
  func.func @transform_1(%arg0: i32, %arg1: i32) -> (i32, i32, i32, i32) {
    %c0_i32 = arith.constant 0 : i32
    %c0_i32_0 = arith.constant 0 : i32
    %c0_i32_1 = arith.constant 0 : i32
    return %arg0, %arg1, %c0_i32, %c0_i32_0 : i32, i32, i32, i32
  }
  func.func @transform_2(%arg0: i32, %arg1: i32) -> (i32, i32, i32) {
    %c0_i32 = arith.constant 0 : i32
    %c0_i32_0 = arith.constant 0 : i32
    %c0_i32_1 = arith.constant 0 : i32
    return %arg0, %c0_i32, %c0_i32_0 : i32, i32, i32
  }
  func.func @transform_3(%arg0: i32, %arg1: i32) -> (i32, i32, i32) {
    %c0_i32 = arith.constant 0 : i32
    %c0_i32_0 = arith.constant 0 : i32
    %c0_i32_1 = arith.constant 0 : i32
    return %arg0, %c0_i32, %c0_i32_0 : i32, i32, i32
  }
  func.func @transform_4(%arg0: i32, %arg1: i32) -> (i32, i32) {
    %c0_i32 = arith.constant 0 : i32
    %c0_i32_0 = arith.constant 0 : i32
    %c0_i32_1 = arith.constant 0 : i32
    return %c0_i32, %c0_i32_0 : i32, i32
  }
  func.func @transform_5(%arg0: i32, %arg1: i32) -> (i32, i32) {
    %c0_i32 = arith.constant 0 : i32
    %c0_i32_0 = arith.constant 0 : i32
    %c0_i32_1 = arith.constant 0 : i32
    return %c0_i32, %c0_i32_0 : i32, i32
  }
  func.func @transform_6(%arg0: i32, %arg1: i32) -> (i32, i32) {
    %c0_i32 = arith.constant 0 : i32
    %c0_i32_0 = arith.constant 0 : i32
    %c0_i32_1 = arith.constant 0 : i32
    return %c0_i32, %c0_i32_0 : i32, i32
  }
  func.func @transform_7(%arg0: i32, %arg1: i32) -> (i32, i32) {
    %c0_i32 = arith.constant 0 : i32
    %c0_i32_0 = arith.constant 0 : i32
    %c0_i32_1 = arith.constant 0 : i32
    return %c0_i32, %c0_i32_0 : i32, i32
  }
  func.func @transform_8(%arg0: i32, %arg1: i32) -> (i32, i32) {
    %c0_i32 = arith.constant 0 : i32
    %c0_i32_0 = arith.constant 0 : i32
    %c0_i32_1 = arith.constant 0 : i32
    return %c0_i32, %c0_i32_0 : i32, i32
  }
  func.func @transform_9(%arg0: i32, %arg1: i32) -> (i32, i32) {
    %c0_i32 = arith.constant 0 : i32
    %c0_i32_0 = arith.constant 0 : i32
    %c0_i32_1 = arith.constant 0 : i32
    return %c0_i32, %c0_i32_0 : i32, i32
  }
  func.func @transform_10(%arg0: i32, %arg1: i32) -> (i32, i32) {
    %c0_i32 = arith.constant 0 : i32
    %c0_i32_0 = arith.constant 0 : i32
    %c0_i32_1 = arith.constant 0 : i32
    return %c0_i32, %c0_i32_0 : i32, i32
  }
  func.func @transform_11(%arg0: i32, %arg1: i32) -> (i32, i32, i32) {
    %c0_i32 = arith.constant 0 : i32
    %c0_i32_0 = arith.constant 0 : i32
    return %arg0, %arg1, %c0_i32 : i32, i32, i32
  }
}

</mosaic_0001>

<llo_original>
// kernel: tile.18
$region0: #{tile.18}
  #allocation0 [shape = 's32[1]{0}', space=sflag, size = 0x4, scoped, tag = 'scoped memory for tile.18']
  %s0 = inlined_call_operand.vmem [shape: f32[16], index: 0, kind: input, shape index: {}]
  %s1 = inlined_call_operand.vmem [shape: f32[3,16], index: 1, kind: output, shape index: {}]
  // Predicated region
  $region2: #{tile.18} parent=0 // pred_check
    _
  $region3: #{tile.18} parent=0 // pred_check_branch
    %3 = sbr.rel (0) target = $region5
  $region4: #{tile.18} parent=0 // pred_region
    _
  $region5: #{tile.18} parent=0 // pred_fallthru
    _
  %v4 = vld [vmem:[%s0] ss:$0 sm:$0xff]
  %5 = vst [vmem:[%s1] sm:$0xf] %v4

// kernel: tile.19
$region0: #{tile.19}
  %s0 = inlined_call_operand.vmem [shape: f32[3,16], index: 0, kind: input, shape index: {}]
  %s1 = inlined_call_operand.vmem [shape: f32[1,48], index: 1, kind: output, shape index: {}]
  $region1: #{tile.19} parent=0
    #allocation0 [shape = 'u8[4096]{0}', space=vmem, size = 0x1000, scoped, tag = 'scoped mem for output reshape']
    #allocation1 [shape = 'u8[4096]{0}', space=vmem, size = 0x1000, scoped, tag = 'scoped mem for input reshape']
    %s3 = sshll.u32 1, 4
    %s4 = ssub.s32 %s3, 1
    %v5 = vld [vmem:[%s0] sm:%s4]
    %6 = vst [vmem:[#allocation1] sm:%s4] %v5
    %v7 = vld [vmem:[#allocation1] sm:$0x1]
    %vm8 = vcmask 130048
    %9 = vst.msk [vmem:[#allocation0] sm:$0x1] %vm8, %v7
    %s10 = scalar_lea.vmem [#allocation1], 2
    %v11 = vld [vmem:[%s10] sm:$0x1]
    %12 = vrot.lane.b32.xlu0 %v11, 32
    %v13 = vpop.permute.xlu0 %12
    %vm14 = vcmask 392448
    %15 = vst.msk [vmem:[#allocation0] sm:$0x1] %vm14, %v13
    %s16 = scalar_lea.vmem [#allocation1], 1
    %v17 = vld [vmem:[%s16] sm:$0x1]
    %18 = vrot.lane.b32.xlu0 %v17, 16
    %v19 = vpop.permute.xlu0 %18
    %vm20 = vcmask 261248
    %21 = vst.msk [vmem:[#allocation0] sm:$0x1] %vm20, %v19
    %s23 = sshll.u32 1, 1
    %s24 = ssub.s32 %s23, 1
    %v26 = vld [vmem:[#allocation0] sm:%s24]
    %s27 = sshll.u32 1, 1
    %s28 = ssub.s32 %s27, 1
    %29 = vst [vmem:[%s1] sm:%s28] %v26

// kernel: res_conv1d_forward.2
$region0: #{res_conv1d_forward.2}
  #allocation0 [shape = 'u32[]', space=smem, size = 0x4, offset = 0x4, fixed_abs, tag = 'smem constant byte address 0x4 - core index']
  #allocation1 [shape = 'u32[144,128]{1,0:T(1,128)}', space=vmem, size = 0x12000, scoped, tag = 'internal scratch']
  %s0 = inlined_call_operand.vmem [shape: f32[2,8,48], index: 0, kind: input, shape index: {}]
  %s1 = inlined_call_operand.vmem [shape: f32[1,48], index: 1, kind: input, shape index: {}]
  %s2 = inlined_call_operand.vmem [shape: f32[1,48], index: 2, kind: input, shape index: {}]
  %s3 = inlined_call_operand.vmem [shape: f32[48,32], index: 3, kind: input, shape index: {}]
  %s4 = inlined_call_operand.vmem [shape: f32[1,32], index: 4, kind: input, shape index: {}]
  %s5 = inlined_call_operand.vmem [shape: f32[1,32], index: 5, kind: input, shape index: {}]
  %s6 = inlined_call_operand.vmem [shape: f32[2,3,32], index: 6, kind: output, shape index: {}]
  %s7 = sld [smem:[#allocation0]]
  $region61: #{res_conv1d_forward.2} parent=0
    _
  %s9 = ssub.s32 1, %s7
  %s10 = scalar_select 0, %s9, %s7
  loop: start=0, step=1, limit=4
  $region2: #{res_conv1d_forward.2} parent=0 // loop_pre_header
    _
  $region3: #{res_conv1d_forward.2} parent=0 // loop_header
    %s12 = sphi 0, %s16
    %p13 = scmp.ge.s32.totalorder %s12, 4
    %s19 = sphi 0, %s31
    %s20 = sphi 0, %s27
    %s21 = sphi 0, %s19
    %s22 = sphi 0, %s20
    %s23 = sphi 0, %s21
    %s24 = sphi 0, %s22
    %s36 = sphi 0, %s38
    %s39 = sphi 0, %s36
    %s40 = sphi 0, %s39
    %s56 = sphi 0, %s40
    %s60 = sphi 0, %s60
    %s62 = sphi 0, %s60
    %s63 = sphi 0, %s62
    %s77 = sphi 0, %s63
    %s81 = sphi 0, %s81
    %s83 = sphi 0, %s81
    %s84 = sphi 0, %s83
    %s98 = sphi 0, %s84
    %s102 = sphi 0, %s102
    %s104 = sphi 0, %s102
    %s105 = sphi 0, %s104
    %s119 = sphi 0, %s105
    %s123 = sphi 0, %s123
    %s125 = sphi 0, %s123
    %s126 = sphi 0, %s125
    %s140 = sphi 0, %s126
    %s144 = sphi 0, %s144
    %s146 = sphi 0, %s144
    %s147 = sphi 0, %s146
    %s161 = sphi 0, %s147
    %s167 = sphi 0, %s169
    %s170 = sphi 0, %s167
    %s171 = sphi 0, %s170
    %s187 = sphi 0, %s171
  $region4: #{res_conv1d_forward.2} parent=0 // loop_header_branch
    %15 = sbr.rel (%p13) target = $region8
  $region5: #{res_conv1d_forward.2} parent=0 // loop_body
    %s17 = ssub.s32 %s12, 1
    %s18 = ssub.s32 %s12, 2
    %s25 = sadd.s32 1, %s20
    %p26 = scmp.ge.s32.totalorder %s25, 1
    %s27 = scalar_select %p26, 0, %s25
    %s28 = sadd.s32 1, %s19
    %s29 = scalar_select %p26, %s28, %s19
    %p30 = scmp.ge.s32.totalorder %s29, 2
    %s31 = scalar_select %p30, 0, %s29
    %s32 = ssub.s32 %s19, %s31
    %s33 = ssub.s32 %s20, %s27
    %s34 = sor.u32 %s32, %s33
    %p35 = scmp.eq.s32.totalorder %s34, 0
    %s37 = sadd.s32 %s36, 1
    %s38 = scalar_select %p35, %s36, %s37
    %p41 = pneg %p35
    %p42 = scmp.eq.s32.totalorder %s12, 1
    %p43 = por %p41, %p42
    %p44 = scmp.ne.s32.totalorder %s36, %s39
    %p45 = scmp.eq.s32.totalorder %s12, 0
    %p46 = por %p44, %p45
    %p47 = scmp.ne.s32.totalorder %s36, %s39
    %p48 = scmp.eq.s32.totalorder %s17, 1
    %p49 = por %p47, %p48
    %p50 = scmp.ne.s32.totalorder %s39, %s40
    %p51 = scmp.eq.s32.totalorder %s17, 0
    %p52 = por %p50, %p51
    %p53 = scmp.ne.s32.totalorder %s39, %s40
    %p54 = scmp.eq.s32.totalorder %s18, 1
    %p55 = por %p53, %p54
    %p57 = scmp.ne.s32.totalorder %s40, %s56
    %p58 = scmp.eq.s32.totalorder %s18, 0
    %p59 = por %p57, %p58
    %s61 = sadd.s32 %s60, 1
    %p64 = scmp.eq.s32.totalorder %s12, 1
    %p65 = scmp.ne.s32.totalorder %s60, %s62
    %p66 = scmp.eq.s32.totalorder %s12, 0
    %p67 = por %p65, %p66
    %p68 = scmp.ne.s32.totalorder %s60, %s62
    %p69 = scmp.eq.s32.totalorder %s17, 1
    %p70 = por %p68, %p69
    %p71 = scmp.ne.s32.totalorder %s62, %s63
    %p72 = scmp.eq.s32.totalorder %s17, 0
    %p73 = por %p71, %p72
    %p74 = scmp.ne.s32.totalorder %s62, %s63
    %p75 = scmp.eq.s32.totalorder %s18, 1
    %p76 = por %p74, %p75
    %p78 = scmp.ne.s32.totalorder %s63, %s77
    %p79 = scmp.eq.s32.totalorder %s18, 0
    %p80 = por %p78, %p79
    %s82 = sadd.s32 %s81, 1
    %p85 = scmp.eq.s32.totalorder %s12, 1
    %p86 = scmp.ne.s32.totalorder %s81, %s83
    %p87 = scmp.eq.s32.totalorder %s12, 0
    %p88 = por %p86, %p87
    %p89 = scmp.ne.s32.totalorder %s81, %s83
    %p90 = scmp.eq.s32.totalorder %s17, 1
    %p91 = por %p89, %p90
    %p92 = scmp.ne.s32.totalorder %s83, %s84
    %p93 = scmp.eq.s32.totalorder %s17, 0
    %p94 = por %p92, %p93
    %p95 = scmp.ne.s32.totalorder %s83, %s84
    %p96 = scmp.eq.s32.totalorder %s18, 1
    %p97 = por %p95, %p96
    %p99 = scmp.ne.s32.totalorder %s84, %s98
    %p100 = scmp.eq.s32.totalorder %s18, 0
    %p101 = por %p99, %p100
    %s103 = sadd.s32 %s102, 1
    %p106 = scmp.eq.s32.totalorder %s12, 1
    %p107 = scmp.ne.s32.totalorder %s102, %s104
    %p108 = scmp.eq.s32.totalorder %s12, 0
    %p109 = por %p107, %p108
    %p110 = scmp.ne.s32.totalorder %s102, %s104
    %p111 = scmp.eq.s32.totalorder %s17, 1
    %p112 = por %p110, %p111
    %p113 = scmp.ne.s32.totalorder %s104, %s105
    %p114 = scmp.eq.s32.totalorder %s17, 0
    %p115 = por %p113, %p114
    %p116 = scmp.ne.s32.totalorder %s104, %s105
    %p117 = scmp.eq.s32.totalorder %s18, 1
    %p118 = por %p116, %p117
    %p120 = scmp.ne.s32.totalorder %s105, %s119
    %p121 = scmp.eq.s32.totalorder %s18, 0
    %p122 = por %p120, %p121
    %s124 = sadd.s32 %s123, 1
    %p127 = scmp.eq.s32.totalorder %s12, 1
    %p128 = scmp.ne.s32.totalorder %s123, %s125
    %p129 = scmp.eq.s32.totalorder %s12, 0
    %p130 = por %p128, %p129
    %p131 = scmp.ne.s32.totalorder %s123, %s125
    %p132 = scmp.eq.s32.totalorder %s17, 1
    %p133 = por %p131, %p132
    %p134 = scmp.ne.s32.totalorder %s125, %s126
    %p135 = scmp.eq.s32.totalorder %s17, 0
    %p136 = por %p134, %p135
    %p137 = scmp.ne.s32.totalorder %s125, %s126
    %p138 = scmp.eq.s32.totalorder %s18, 1
    %p139 = por %p137, %p138
    %p141 = scmp.ne.s32.totalorder %s126, %s140
    %p142 = scmp.eq.s32.totalorder %s18, 0
    %p143 = por %p141, %p142
    %s145 = sadd.s32 %s144, 1
    %p148 = scmp.eq.s32.totalorder %s12, 1
    %p149 = scmp.ne.s32.totalorder %s144, %s146
    %p150 = scmp.eq.s32.totalorder %s12, 0
    %p151 = por %p149, %p150
    %p152 = scmp.ne.s32.totalorder %s144, %s146
    %p153 = scmp.eq.s32.totalorder %s17, 1
    %p154 = por %p152, %p153
    %p155 = scmp.ne.s32.totalorder %s146, %s147
    %p156 = scmp.eq.s32.totalorder %s17, 0
    %p157 = por %p155, %p156
    %p158 = scmp.ne.s32.totalorder %s146, %s147
    %p159 = scmp.eq.s32.totalorder %s18, 1
    %p160 = por %p158, %p159
    %p162 = scmp.ne.s32.totalorder %s147, %s161
    %p163 = scmp.eq.s32.totalorder %s18, 0
    %p164 = por %p162, %p163
    %s165 = ssub.s32 %s19, %s31
    %p166 = scmp.eq.s32.totalorder %s165, 0
    %s168 = sadd.s32 %s167, 1
    %s169 = scalar_select %p166, %s167, %s168
    %p172 = pneg %p166
    %p173 = scmp.eq.s32.totalorder %s12, 1
    %p174 = por %p172, %p173
    %p175 = scmp.ne.s32.totalorder %s167, %s170
    %p176 = scmp.eq.s32.totalorder %s12, 0
    %p177 = por %p175, %p176
    %p178 = scmp.ne.s32.totalorder %s167, %s170
    %p179 = scmp.eq.s32.totalorder %s17, 1
    %p180 = por %p178, %p179
    %p181 = scmp.ne.s32.totalorder %s170, %s171
    %p182 = scmp.eq.s32.totalorder %s17, 0
    %p183 = por %p181, %p182
    %p184 = scmp.ne.s32.totalorder %s170, %s171
    %p185 = scmp.eq.s32.totalorder %s18, 1
    %p186 = por %p184, %p185
    %p188 = scmp.ne.s32.totalorder %s171, %s187
    %p189 = scmp.eq.s32.totalorder %s18, 0
    %p190 = por %p188, %p189
    %p191 = scmp.le.s32.totalorder 1, %s12
    %p192 = scmp.lt.s32.totalorder %s12, 3
    %p193 = pnand %p191, %p192
    %p194 = pneg %p193
    // Predicated region
    $region9: #{res_conv1d_forward.2} parent=5 // pred_check
      _
    $region10: #{res_conv1d_forward.2} parent=5 // pred_check_branch
      %196 = sbr.rel (%p193) target = $region12
    $region11: #{res_conv1d_forward.2} parent=5 // pred_region
      %s197 = ssub.s32 %s12, 1
      // Predicated region
      $region13: #{res_conv1d_forward.2} parent=11 // pred_check
        %p198 = pneg %p73
      $region14: #{res_conv1d_forward.2} parent=11 // pred_check_branch
        %200 = sbr.rel (%p198) target = $region16
      $region15: #{res_conv1d_forward.2} parent=11 // pred_region
        _
      $region16: #{res_conv1d_forward.2} parent=11 // pred_fallthru
        _
      // Predicated region
      $region17: #{res_conv1d_forward.2} parent=11 // pred_check
        %p201 = pneg %p94
      $region18: #{res_conv1d_forward.2} parent=11 // pred_check_branch
        %203 = sbr.rel (%p201) target = $region20
      $region19: #{res_conv1d_forward.2} parent=11 // pred_region
        _
      $region20: #{res_conv1d_forward.2} parent=11 // pred_fallthru
        _
      // Predicated region
      $region21: #{res_conv1d_forward.2} parent=11 // pred_check
        %p204 = pneg %p115
      $region22: #{res_conv1d_forward.2} parent=11 // pred_check_branch
        %206 = sbr.rel (%p204) target = $region24
      $region23: #{res_conv1d_forward.2} parent=11 // pred_region
        _
      $region24: #{res_conv1d_forward.2} parent=11 // pred_fallthru
        _
      // Predicated region
      $region25: #{res_conv1d_forward.2} parent=11 // pred_check
        %p207 = pneg %p136
      $region26: #{res_conv1d_forward.2} parent=11 // pred_check_branch
        %209 = sbr.rel (%p207) target = $region28
      $region27: #{res_conv1d_forward.2} parent=11 // pred_region
        _
      $region28: #{res_conv1d_forward.2} parent=11 // pred_fallthru
        _
      // Predicated region
      $region29: #{res_conv1d_forward.2} parent=11 // pred_check
        %p210 = pneg %p157
      $region30: #{res_conv1d_forward.2} parent=11 // pred_check_branch
        %212 = sbr.rel (%p210) target = $region32
      $region31: #{res_conv1d_forward.2} parent=11 // pred_region
        _
      $region32: #{res_conv1d_forward.2} parent=11 // pred_fallthru
        _
    $region12: #{res_conv1d_forward.2} parent=5 // pred_fallthru
      _
    %p213 = scmp.lt.s32.totalorder %s12, 2
    // Predicated region
    $region33: #{res_conv1d_forward.2} parent=5 // pred_check
      %p214 = pneg %p213
    $region34: #{res_conv1d_forward.2} parent=5 // pred_check_branch
      %216 = sbr.rel (%p214) target = $region36
    $region35: #{res_conv1d_forward.2} parent=5 // pred_region
      // Predicated region
      $region37: #{res_conv1d_forward.2} parent=35 // pred_check
        %p217 = pneg %p46
      $region38: #{res_conv1d_forward.2} parent=35 // pred_check_branch
        %219 = sbr.rel (%p217) target = $region40
      $region39: #{res_conv1d_forward.2} parent=35 // pred_region
        %p220 = scmp.lt.s32.totalorder %s19, 1
        %s221 = scalar_select %p220, %s19, 1
        %p222 = scmp.lt.s32.totalorder %s20, 0
        %s223 = scalar_select %p222, %s20, 0
        %s224 = sadd.s32 %s223, %s221
        %s225 = smul.addr %s224, 8
        %s226 = scalar_lea.vmem %s0, %s225
      $region40: #{res_conv1d_forward.2} parent=35 // pred_fallthru
        _
    $region36: #{res_conv1d_forward.2} parent=5 // pred_fallthru
      _
    %p227 = scmp.le.s32.totalorder 1, %s12
    %p228 = scmp.lt.s32.totalorder %s12, 3
    %p229 = pnand %p227, %p228
    %p230 = pneg %p229
    // Predicated region
    $region41: #{res_conv1d_forward.2} parent=5 // pred_check
      _
    $region42: #{res_conv1d_forward.2} parent=5 // pred_check_branch
      %232 = sbr.rel (%p229) target = $region44
    $region43: #{res_conv1d_forward.2} parent=5 // pred_region
      %s233 = ssub.s32 %s12, 1
      %p234 = scmp.lt.s32.totalorder %s21, 1
      %s235 = scalar_select %p234, %s21, 1
      %p236 = scmp.lt.s32.totalorder %s22, 0
      %s237 = scalar_select %p236, %s22, 0
      %s238 = sadd.s32 %s237, %s235
      %s239 = smul.addr %s238, 8
      %s240 = scalar_lea.vmem %s0, %s239
      %p241 = pneg %p52
      %p242 = pneg %p49
      %p243 = pneg %p73
      %p244 = pneg %p70
      %p245 = pneg %p94
      %p246 = pneg %p91
      %p247 = pneg %p115
      %p248 = pneg %p112
      %p249 = pneg %p136
      %p250 = pneg %p133
      %p251 = pneg %p157
      %p252 = pneg %p154
      %p253 = pneg %p183
      %p254 = pneg %p180
      %p255 = scmp.lt.s32.totalorder %s21, 1
      %s256 = scalar_select %p255, %s21, 1
      %s257 = smul.addr %s256, 4
      %s258 = scalar_lea.vmem %s6, %s257
      %p259 = scmp.lt.s32.totalorder %s21, 1
      %s260 = scalar_select %p259, %s21, 1
      %p261 = scmp.lt.s32.totalorder %s22, 0
      %s262 = scalar_select %p261, %s22, 0
      %s263 = sadd.s32 %s262, %s260
      %s264 = smul.addr %s263, 8
      %s265 = scalar_lea.vmem %s0, %s264
      %p266 = scmp.lt.s32.totalorder %s21, 1
      %s267 = scalar_select %p266, %s21, 1
      %s268 = smul.addr %s267, 4
      %s269 = scalar_lea.vmem %s6, %s268
      %v270 = vld [vmem:[%s265] sm:$0xff]
      %v271 = vld [vmem:[%s1] sm:$0x1]
      %v273 = vlaneseq
      %v274 = vshrl.u32 %v273, 7
      %v275 = vsub.s32 0, %v274
      %v276 = vrot.slane %v271, %v275
      %v278 = vmul.f32 %v270, %v276
      %v279 = vld [vmem:[%s2] sm:$0x1]
      %v281 = vlaneseq
      %v282 = vshrl.u32 %v281, 7
      %v283 = vsub.s32 0, %v282
      %v284 = vrot.slane %v279, %v283
      %v286 = vadd.f32 %v278, %v284
      %v287 = vmax.f32 %v286, 0.0
      %v288 = vld [vmem:[%s3] sm:$0xff]
      %v289 = vld [vmem:[%s3 + $0x8] sm:$0xff]
      %v290 = vld [vmem:[%s3 + $0x10] sm:$0xff]
      %v291 = vld [vmem:[%s3 + $0x18] sm:$0xff]
      %v292 = vld [vmem:[%s3 + $0x20] sm:$0xff]
      %v293 = vld [vmem:[%s3 + $0x28] sm:$0xff]
      %vm294 = vcmask 392192
      %v296 = vsel %vm294, %v287, 0
      %298 = vmatprep.subr.mxu0 0.0
      %299 = vmatpush1.msra.mxu0 0.0
      %300 = vmatprep.subr.mxu0 0.0
      %301 = vmatpush1.msra.mxu0 0.0
      %302 = vmatprep.subr.mxu0 0.0
      %303 = vmatpush1.msra.mxu0 0.0
      %304 = vmatprep.subr.mxu0 0.0
      %305 = vmatpush1.msra.mxu0 0.0
      %306 = vmatprep.subr.mxu0 0.0
      %307 = vmatpush1.msra.mxu0 0.0
      %308 = vmatprep.subr.mxu0 0.0
      %309 = vmatpush1.msra.mxu0 0.0
      %310 = vmatprep.subr.mxu0 0.0
      %311 = vmatpush1.msra.mxu0 0.0
      %312 = vmatprep.subr.mxu0 0.0
      %313 = vmatpush1.msra.mxu0 0.0
      %314 = vmatprep.subr.mxu0 0.0
      %315 = vmatpush1.msra.mxu0 0.0
      %316 = vmatprep.subr.mxu0 0.0
      %317 = vmatpush1.msra.mxu0 0.0
      %318 = vmatprep.subr.mxu0 0.0
      %319 = vmatpush1.msra.mxu0 %v293
      %320 = vmatprep.subr.mxu0 0.0
      %321 = vmatpush1.msra.mxu0 %v292
      %322 = vmatprep.subr.mxu0 0.0
      %323 = vmatpush1.msra.mxu0 %v291
      %324 = vmatprep.subr.mxu0 0.0
      %325 = vmatpush1.msra.mxu0 %v290
      %326 = vmatprep.subr.mxu0 0.0
      %327 = vmatpush1.msra.mxu0 %v289
      %328 = vmatprep.subr.mxu0 0.0
      %329 = vmatpush1.msra.mxu0 %v288
      %330 = vmatprep.subr.mxu0 0.0
      %331 = vmatpush2.msra.mxu0 0.0
      %332 = vmatprep.subr.mxu0 0.0
      %333 = vmatpush2.msra.mxu0 0.0
      %334 = vmatprep.subr.mxu0 0.0
      %335 = vmatpush2.msra.mxu0 0.0
      %336 = vmatprep.subr.mxu0 0.0
      %337 = vmatpush2.msra.mxu0 0.0
      %338 = vmatprep.subr.mxu0 0.0
      %339 = vmatpush2.msra.mxu0 0.0
      %340 = vmatprep.subr.mxu0 0.0
      %341 = vmatpush2.msra.mxu0 0.0
      %342 = vmatprep.subr.mxu0 0.0
      %343 = vmatpush2.msra.mxu0 0.0
      %344 = vmatprep.subr.mxu0 0.0
      %345 = vmatpush2.msra.mxu0 0.0
      %346 = vmatprep.subr.mxu0 0.0
      %347 = vmatpush2.msra.mxu0 0.0
      %348 = vmatprep.subr.mxu0 0.0
      %349 = vmatpush2.msra.mxu0 0.0
      %350 = vmatprep.subr.mxu0 0.0
      %351 = vmatpush2.msra.mxu0 0.0
      %352 = vmatprep.subr.mxu0 0.0
      %353 = vmatpush2.msra.mxu0 0.0
      %354 = vmatprep.subr.mxu0 0.0
      %355 = vmatpush2.msra.mxu0 0.0
      %356 = vmatprep.subr.mxu0 0.0
      %357 = vmatpush2.msra.mxu0 0.0
      %358 = vmatprep.subr.mxu0 0.0
      %359 = vmatpush2.msra.mxu0 0.0
      %360 = vmatprep.subr.mxu0 0.0
      %361 = vmatpush2.msra.mxu0 0.0
      %362 = vmatprep.mubr.f32.mxu0 0.0
      %363 = vmatmul.mubr.f32.gmra.mxu0 %v296
      %v364 = vpop.f32.mrf.mxu0
      %v365 = vadd.f32 0.0, %v364
      %v366 = vpop.f32.mrf.mxu0
      %367 = vdwg.mxu0
      %v368 = vld [vmem:[%s4] sm:$0x1]
      %v370 = vlaneseq
      %v371 = vshrl.u32 %v370, 7
      %v372 = vsub.s32 0, %v371
      %v373 = vrot.slane %v368, %v372
      %v375 = vmul.f32 %v365, %v373
      %v376 = vld [vmem:[%s5] sm:$0x1]
      %v378 = vlaneseq
      %v379 = vshrl.u32 %v378, 7
      %v380 = vsub.s32 0, %v379
      %v381 = vrot.slane %v376, %v380
      %v383 = vadd.f32 %v375, %v381
      %v384 = vmax.f32 %v383, 0.0
      %s385 = smul.u32 %s22, 8
      %v386 = vlaneseq
      %v387 = vshrl.u32 %v386, 7
      %v388 = vstv %s385
      %v389 = vadd.s32 %v388, %v387
      %vm390 = vcmask 261120
      %v391 = vsel %vm390, %v384, 0.0
      %v392 = vrot.slane %v391, 4
      %v393 = vadd.f32 %v391, %v392
      %v394 = vrot.slane %v393, 2
      %v395 = vadd.f32 %v393, %v394
      %v396 = vrot.slane %v395, 1
      %v397 = vadd.f32 %v395, %v396
      %vm398 = vcmp.lt.s32.totalorder %v389, 2
      %v399 = vsel %vm398, 1, 0
      %vm400 = vcmp.eq.s32.totalorder %v399, 1
      %v401 = vsel %vm400, %v384, 0.0
      %v402 = vsel %vm390, %v401, 0.0
      %v403 = vrot.slane %v402, 4
      %v404 = vadd.f32 %v402, %v403
      %v405 = vrot.slane %v404, 2
      %v406 = vadd.f32 %v404, %v405
      %v407 = vrot.slane %v406, 1
      %v408 = vadd.f32 %v406, %v407
      %vm409 = vcmp.ge.s32.totalorder %v389, 6
      %v410 = vsel %vm409, 1, 0
      %vm411 = vcmp.eq.s32.totalorder %v410, 1
      %v412 = vsel %vm411, %v384, 0.0
      %v413 = vsel %vm390, %v412, 0.0
      %v414 = vrot.slane %v413, 4
      %v415 = vadd.f32 %v413, %v414
      %v416 = vrot.slane %v415, 2
      %v417 = vadd.f32 %v415, %v416
      %v418 = vrot.slane %v417, 1
      %v419 = vadd.f32 %v417, %v418
      %vm420 = vcmask 1040384
      %v421 = vsel %vm420, %v397, %v408
      %vm422 = vcmask 1041408
      %v423 = vsel %vm422, %v421, %v419
      %p424 = scmp.eq.s32.totalorder %s22, 0
      // Predicated region
      $region45: #{res_conv1d_forward.2} parent=43 // pred_check
        %p425 = pneg %p424
      $region46: #{res_conv1d_forward.2} parent=43 // pred_check_branch
        %427 = sbr.rel (%p425) target = $region48
      $region47: #{res_conv1d_forward.2} parent=43 // pred_region
        %vm428 = vcmask 256000
        %429 = vst.msk [vmem:[%s269] sm:$0x7] %vm428, 0.0
      $region48: #{res_conv1d_forward.2} parent=43 // pred_fallthru
        _
      %v430 = vld [vmem:[%s269] sm:$0x7]
      %v431 = vadd.f32 %v430, %v423
      %vm432 = vcmask 256000
      %433 = vst.msk [vmem:[%s269] sm:$0x7] %vm432, %v431
      %p434 = scmp.lt.s32.totalorder %s21, 1
      %s435 = scalar_select %p434, %s21, 1
      %s436 = smul.addr %s435, 4
      %s437 = scalar_lea.vmem %s6, %s436
      // Predicated region
      $region49: #{res_conv1d_forward.2} parent=43 // pred_check
        %p438 = pneg %p180
      $region50: #{res_conv1d_forward.2} parent=43 // pred_check_branch
        %440 = sbr.rel (%p438) target = $region52
      $region51: #{res_conv1d_forward.2} parent=43 // pred_region
        _
      $region52: #{res_conv1d_forward.2} parent=43 // pred_fallthru
        _
    $region44: #{res_conv1d_forward.2} parent=5 // pred_fallthru
      _
    %p441 = scmp.le.s32.totalorder 2, %s12
    // Predicated region
    $region53: #{res_conv1d_forward.2} parent=5 // pred_check
      %p442 = pneg %p441
    $region54: #{res_conv1d_forward.2} parent=5 // pred_check_branch
      %444 = sbr.rel (%p442) target = $region56
    $region55: #{res_conv1d_forward.2} parent=5 // pred_region
      %s445 = ssub.s32 %s12, 2
      // Predicated region
      $region57: #{res_conv1d_forward.2} parent=55 // pred_check
        %p446 = pneg %p186
      $region58: #{res_conv1d_forward.2} parent=55 // pred_check_branch
        %448 = sbr.rel (%p446) target = $region60
      $region59: #{res_conv1d_forward.2} parent=55 // pred_region
        %p449 = scmp.lt.s32.totalorder %s23, 1
        %s450 = scalar_select %p449, %s23, 1
        %s451 = smul.addr %s450, 4
        %s452 = scalar_lea.vmem %s6, %s451
      $region60: #{res_conv1d_forward.2} parent=55 // pred_fallthru
        _
    $region56: #{res_conv1d_forward.2} parent=5 // pred_fallthru
      _
  $region6: #{res_conv1d_forward.2} parent=0 // loop_footer
    %s16 = sadd.s32 1, %s12
  $region7: #{res_conv1d_forward.2} parent=0 // loop_footer_branch
    %11 = sbr.rel target = $region3
  $region8: #{res_conv1d_forward.2} parent=0 // loop_exit
    _

// kernel: res_conv1d_forward.3
$region0: #{res_conv1d_forward.3}
  #allocation0 [shape = 'u32[]', space=smem, size = 0x4, offset = 0x4, fixed_abs, tag = 'smem constant byte address 0x4 - core index']
  #allocation1 [shape = 'u32[144,128]{1,0:T(1,128)}', space=vmem, size = 0x12000, scoped, tag = 'internal scratch']
  %s0 = inlined_call_operand.vmem [shape: f32[2,4,96], index: 0, kind: input, shape index: {}]
  %s1 = inlined_call_operand.vmem [shape: f32[2,1,2,48], index: 1, kind: input, shape index: {}]
  %s2 = inlined_call_operand.vmem [shape: f32[2,1,32], index: 2, kind: input, shape index: {}]
  %s3 = inlined_call_operand.vmem [shape: f32[2,1,32], index: 3, kind: input, shape index: {}]
  %s4 = inlined_call_operand.vmem [shape: f32[1,48], index: 4, kind: input, shape index: {}]
  %s5 = inlined_call_operand.vmem [shape: f32[1,48], index: 5, kind: input, shape index: {}]
  %s6 = inlined_call_operand.vmem [shape: f32[48,32], index: 6, kind: input, shape index: {}]
  %s7 = inlined_call_operand.vmem [shape: f32[1,32], index: 7, kind: input, shape index: {}]
  %s8 = inlined_call_operand.vmem [shape: f32[1,32], index: 8, kind: input, shape index: {}]
  %s9 = inlined_call_operand.vmem [shape: f32[96,32], index: 9, kind: input, shape index: {}]
  %s10 = inlined_call_operand.vmem [shape: f32[48,32], index: 10, kind: input, shape index: {}]
  %s11 = inlined_call_operand.hbm [shape: f32[2,4,32], index: 11, kind: output, shape index: {}]
  %s12 = sld [smem:[#allocation0]]
  $region77: #{res_conv1d_forward.3} parent=0
    _
  %s14 = ssub.s32 1, %s12
  %s15 = scalar_select 0, %s14, %s12
  $region1: #{res_conv1d_forward.3} parent=0
    #allocation2 [shape = 'u8[4096]{0}', space=vmem, size = 0x1000, scoped, tag = 'output window, operand 0']
    #allocation3 [shape = 's32[2]{0}', space=sflag, size = 0x8, scoped, tag = 'scoped memory for res_conv1d_forward.3']
    %16 = vsyncpa [#allocation3], 0
    %s17 = scalar_lea.sflag [#allocation3], 1
    %18 = vsyncpa %s17, 0
    loop: start=0, step=1, limit=4
    $region2: #{res_conv1d_forward.3} parent=1 // loop_pre_header
      _
    $region3: #{res_conv1d_forward.3} parent=1 // loop_header
      %s20 = sphi 0, %s24
      %p21 = scmp.ge.s32.totalorder %s20, 4
      %s27 = sphi 0, %s39
      %s28 = sphi 0, %s35
      %s29 = sphi 0, %s27
      %s30 = sphi 0, %s28
      %s31 = sphi 0, %s29
      %s32 = sphi 0, %s30
      %s44 = sphi 0, %s46
      %s47 = sphi 0, %s44
      %s48 = sphi 0, %s47
      %s64 = sphi 0, %s48
      %s72 = sphi 0, %s74
      %s75 = sphi 0, %s72
      %s76 = sphi 0, %s75
      %s92 = sphi 0, %s76
      %s98 = sphi 0, %s100
      %s101 = sphi 0, %s98
      %s102 = sphi 0, %s101
      %s118 = sphi 0, %s102
      %s124 = sphi 0, %s126
      %s127 = sphi 0, %s124
      %s128 = sphi 0, %s127
      %s144 = sphi 0, %s128
      %s148 = sphi 0, %s148
      %s150 = sphi 0, %s148
      %s151 = sphi 0, %s150
      %s165 = sphi 0, %s151
      %s169 = sphi 0, %s169
      %s171 = sphi 0, %s169
      %s172 = sphi 0, %s171
      %s186 = sphi 0, %s172
      %s190 = sphi 0, %s190
      %s192 = sphi 0, %s190
      %s193 = sphi 0, %s192
      %s207 = sphi 0, %s193
      %s211 = sphi 0, %s211
      %s213 = sphi 0, %s211
      %s214 = sphi 0, %s213
      %s228 = sphi 0, %s214
      %s232 = sphi 0, %s232
      %s234 = sphi 0, %s232
      %s235 = sphi 0, %s234
      %s249 = sphi 0, %s235
      %s253 = sphi 0, %s253
      %s255 = sphi 0, %s253
      %s256 = sphi 0, %s255
      %s270 = sphi 0, %s256
      %s274 = sphi 0, %s274
      %s276 = sphi 0, %s274
      %s277 = sphi 0, %s276
      %s291 = sphi 0, %s277
      %s299 = sphi 0, %s301
      %s302 = sphi 0, %s299
      %s303 = sphi 0, %s302
      %s319 = sphi 0, %s303
    $region4: #{res_conv1d_forward.3} parent=1 // loop_header_branch
      %23 = sbr.rel (%p21) target = $region8
    $region5: #{res_conv1d_forward.3} parent=1 // loop_body
      %s25 = ssub.s32 %s20, 1
      %s26 = ssub.s32 %s20, 2
      %s33 = sadd.s32 1, %s28
      %p34 = scmp.ge.s32.totalorder %s33, 1
      %s35 = scalar_select %p34, 0, %s33
      %s36 = sadd.s32 1, %s27
      %s37 = scalar_select %p34, %s36, %s27
      %p38 = scmp.ge.s32.totalorder %s37, 2
      %s39 = scalar_select %p38, 0, %s37
      %s40 = ssub.s32 %s27, %s39
      %s41 = ssub.s32 %s28, %s35
      %s42 = sor.u32 %s40, %s41
      %p43 = scmp.eq.s32.totalorder %s42, 0
      %s45 = sadd.s32 %s44, 1
      %s46 = scalar_select %p43, %s44, %s45
      %p49 = pneg %p43
      %p50 = scmp.eq.s32.totalorder %s20, 1
      %p51 = por %p49, %p50
      %p52 = scmp.ne.s32.totalorder %s44, %s47
      %p53 = scmp.eq.s32.totalorder %s20, 0
      %p54 = por %p52, %p53
      %p55 = scmp.ne.s32.totalorder %s44, %s47
      %p56 = scmp.eq.s32.totalorder %s25, 1
      %p57 = por %p55, %p56
      %p58 = scmp.ne.s32.totalorder %s47, %s48
      %p59 = scmp.eq.s32.totalorder %s25, 0
      %p60 = por %p58, %p59
      %p61 = scmp.ne.s32.totalorder %s47, %s48
      %p62 = scmp.eq.s32.totalorder %s26, 1
      %p63 = por %p61, %p62
      %p65 = scmp.ne.s32.totalorder %s48, %s64
      %p66 = scmp.eq.s32.totalorder %s26, 0
      %p67 = por %p65, %p66
      %s68 = ssub.s32 %s27, %s39
      %s69 = ssub.s32 %s28, %s35
      %s70 = sor.u32 %s68, %s69
      %p71 = scmp.eq.s32.totalorder %s70, 0
      %s73 = sadd.s32 %s72, 1
      %s74 = scalar_select %p71, %s72, %s73
      %p77 = pneg %p71
      %p78 = scmp.eq.s32.totalorder %s20, 1
      %p79 = por %p77, %p78
      %p80 = scmp.ne.s32.totalorder %s72, %s75
      %p81 = scmp.eq.s32.totalorder %s20, 0
      %p82 = por %p80, %p81
      %p83 = scmp.ne.s32.totalorder %s72, %s75
      %p84 = scmp.eq.s32.totalorder %s25, 1
      %p85 = por %p83, %p84
      %p86 = scmp.ne.s32.totalorder %s75, %s76
      %p87 = scmp.eq.s32.totalorder %s25, 0
      %p88 = por %p86, %p87
      %p89 = scmp.ne.s32.totalorder %s75, %s76
      %p90 = scmp.eq.s32.totalorder %s26, 1
      %p91 = por %p89, %p90
      %p93 = scmp.ne.s32.totalorder %s76, %s92
      %p94 = scmp.eq.s32.totalorder %s26, 0
      %p95 = por %p93, %p94
      %s96 = ssub.s32 %s27, %s39
      %p97 = scmp.eq.s32.totalorder %s96, 0
      %s99 = sadd.s32 %s98, 1
      %s100 = scalar_select %p97, %s98, %s99
      %p103 = pneg %p97
      %p104 = scmp.eq.s32.totalorder %s20, 1
      %p105 = por %p103, %p104
      %p106 = scmp.ne.s32.totalorder %s98, %s101
      %p107 = scmp.eq.s32.totalorder %s20, 0
      %p108 = por %p106, %p107
      %p109 = scmp.ne.s32.totalorder %s98, %s101
      %p110 = scmp.eq.s32.totalorder %s25, 1
      %p111 = por %p109, %p110
      %p112 = scmp.ne.s32.totalorder %s101, %s102
      %p113 = scmp.eq.s32.totalorder %s25, 0
      %p114 = por %p112, %p113
      %p115 = scmp.ne.s32.totalorder %s101, %s102
      %p116 = scmp.eq.s32.totalorder %s26, 1
      %p117 = por %p115, %p116
      %p119 = scmp.ne.s32.totalorder %s102, %s118
      %p120 = scmp.eq.s32.totalorder %s26, 0
      %p121 = por %p119, %p120
      %s122 = ssub.s32 %s27, %s39
      %p123 = scmp.eq.s32.totalorder %s122, 0
      %s125 = sadd.s32 %s124, 1
      %s126 = scalar_select %p123, %s124, %s125
      %p129 = pneg %p123
      %p130 = scmp.eq.s32.totalorder %s20, 1
      %p131 = por %p129, %p130
      %p132 = scmp.ne.s32.totalorder %s124, %s127
      %p133 = scmp.eq.s32.totalorder %s20, 0
      %p134 = por %p132, %p133
      %p135 = scmp.ne.s32.totalorder %s124, %s127
      %p136 = scmp.eq.s32.totalorder %s25, 1
      %p137 = por %p135, %p136
      %p138 = scmp.ne.s32.totalorder %s127, %s128
      %p139 = scmp.eq.s32.totalorder %s25, 0
      %p140 = por %p138, %p139
      %p141 = scmp.ne.s32.totalorder %s127, %s128
      %p142 = scmp.eq.s32.totalorder %s26, 1
      %p143 = por %p141, %p142
      %p145 = scmp.ne.s32.totalorder %s128, %s144
      %p146 = scmp.eq.s32.totalorder %s26, 0
      %p147 = por %p145, %p146
      %s149 = sadd.s32 %s148, 1
      %p152 = scmp.eq.s32.totalorder %s20, 1
      %p153 = scmp.ne.s32.totalorder %s148, %s150
      %p154 = scmp.eq.s32.totalorder %s20, 0
      %p155 = por %p153, %p154
      %p156 = scmp.ne.s32.totalorder %s148, %s150
      %p157 = scmp.eq.s32.totalorder %s25, 1
      %p158 = por %p156, %p157
      %p159 = scmp.ne.s32.totalorder %s150, %s151
      %p160 = scmp.eq.s32.totalorder %s25, 0
      %p161 = por %p159, %p160
      %p162 = scmp.ne.s32.totalorder %s150, %s151
      %p163 = scmp.eq.s32.totalorder %s26, 1
      %p164 = por %p162, %p163
      %p166 = scmp.ne.s32.totalorder %s151, %s165
      %p167 = scmp.eq.s32.totalorder %s26, 0
      %p168 = por %p166, %p167
      %s170 = sadd.s32 %s169, 1
      %p173 = scmp.eq.s32.totalorder %s20, 1
      %p174 = scmp.ne.s32.totalorder %s169, %s171
      %p175 = scmp.eq.s32.totalorder %s20, 0
      %p176 = por %p174, %p175
      %p177 = scmp.ne.s32.totalorder %s169, %s171
      %p178 = scmp.eq.s32.totalorder %s25, 1
      %p179 = por %p177, %p178
      %p180 = scmp.ne.s32.totalorder %s171, %s172
      %p181 = scmp.eq.s32.totalorder %s25, 0
      %p182 = por %p180, %p181
      %p183 = scmp.ne.s32.totalorder %s171, %s172
      %p184 = scmp.eq.s32.totalorder %s26, 1
      %p185 = por %p183, %p184
      %p187 = scmp.ne.s32.totalorder %s172, %s186
      %p188 = scmp.eq.s32.totalorder %s26, 0
      %p189 = por %p187, %p188
      %s191 = sadd.s32 %s190, 1
      %p194 = scmp.eq.s32.totalorder %s20, 1
      %p195 = scmp.ne.s32.totalorder %s190, %s192
      %p196 = scmp.eq.s32.totalorder %s20, 0
      %p197 = por %p195, %p196
      %p198 = scmp.ne.s32.totalorder %s190, %s192
      %p199 = scmp.eq.s32.totalorder %s25, 1
      %p200 = por %p198, %p199
      %p201 = scmp.ne.s32.totalorder %s192, %s193
      %p202 = scmp.eq.s32.totalorder %s25, 0
      %p203 = por %p201, %p202
      %p204 = scmp.ne.s32.totalorder %s192, %s193
      %p205 = scmp.eq.s32.totalorder %s26, 1
      %p206 = por %p204, %p205
      %p208 = scmp.ne.s32.totalorder %s193, %s207
      %p209 = scmp.eq.s32.totalorder %s26, 0
      %p210 = por %p208, %p209
      %s212 = sadd.s32 %s211, 1
      %p215 = scmp.eq.s32.totalorder %s20, 1
      %p216 = scmp.ne.s32.totalorder %s211, %s213
      %p217 = scmp.eq.s32.totalorder %s20, 0
      %p218 = por %p216, %p217
      %p219 = scmp.ne.s32.totalorder %s211, %s213
      %p220 = scmp.eq.s32.totalorder %s25, 1
      %p221 = por %p219, %p220
      %p222 = scmp.ne.s32.totalorder %s213, %s214
      %p223 = scmp.eq.s32.totalorder %s25, 0
      %p224 = por %p222, %p223
      %p225 = scmp.ne.s32.totalorder %s213, %s214
      %p226 = scmp.eq.s32.totalorder %s26, 1
      %p227 = por %p225, %p226
      %p229 = scmp.ne.s32.totalorder %s214, %s228
      %p230 = scmp.eq.s32.totalorder %s26, 0
      %p231 = por %p229, %p230
      %s233 = sadd.s32 %s232, 1
      %p236 = scmp.eq.s32.totalorder %s20, 1
      %p237 = scmp.ne.s32.totalorder %s232, %s234
      %p238 = scmp.eq.s32.totalorder %s20, 0
      %p239 = por %p237, %p238
      %p240 = scmp.ne.s32.totalorder %s232, %s234
      %p241 = scmp.eq.s32.totalorder %s25, 1
      %p242 = por %p240, %p241
      %p243 = scmp.ne.s32.totalorder %s234, %s235
      %p244 = scmp.eq.s32.totalorder %s25, 0
      %p245 = por %p243, %p244
      %p246 = scmp.ne.s32.totalorder %s234, %s235
      %p247 = scmp.eq.s32.totalorder %s26, 1
      %p248 = por %p246, %p247
      %p250 = scmp.ne.s32.totalorder %s235, %s249
      %p251 = scmp.eq.s32.totalorder %s26, 0
      %p252 = por %p250, %p251
      %s254 = sadd.s32 %s253, 1
      %p257 = scmp.eq.s32.totalorder %s20, 1
      %p258 = scmp.ne.s32.totalorder %s253, %s255
      %p259 = scmp.eq.s32.totalorder %s20, 0
      %p260 = por %p258, %p259
      %p261 = scmp.ne.s32.totalorder %s253, %s255
      %p262 = scmp.eq.s32.totalorder %s25, 1
      %p263 = por %p261, %p262
      %p264 = scmp.ne.s32.totalorder %s255, %s256
      %p265 = scmp.eq.s32.totalorder %s25, 0
      %p266 = por %p264, %p265
      %p267 = scmp.ne.s32.totalorder %s255, %s256
      %p268 = scmp.eq.s32.totalorder %s26, 1
      %p269 = por %p267, %p268
      %p271 = scmp.ne.s32.totalorder %s256, %s270
      %p272 = scmp.eq.s32.totalorder %s26, 0
      %p273 = por %p271, %p272
      %s275 = sadd.s32 %s274, 1
      %p278 = scmp.eq.s32.totalorder %s20, 1
      %p279 = scmp.ne.s32.totalorder %s274, %s276
      %p280 = scmp.eq.s32.totalorder %s20, 0
      %p281 = por %p279, %p280
      %p282 = scmp.ne.s32.totalorder %s274, %s276
      %p283 = scmp.eq.s32.totalorder %s25, 1
      %p284 = por %p282, %p283
      %p285 = scmp.ne.s32.totalorder %s276, %s277
      %p286 = scmp.eq.s32.totalorder %s25, 0
      %p287 = por %p285, %p286
      %p288 = scmp.ne.s32.totalorder %s276, %s277
      %p289 = scmp.eq.s32.totalorder %s26, 1
      %p290 = por %p288, %p289
      %p292 = scmp.ne.s32.totalorder %s277, %s291
      %p293 = scmp.eq.s32.totalorder %s26, 0
      %p294 = por %p292, %p293
      %s295 = ssub.s32 %s27, %s39
      %s296 = ssub.s32 %s28, %s35
      %s297 = sor.u32 %s295, %s296
      %p298 = scmp.eq.s32.totalorder %s297, 0
      %s300 = sadd.s32 %s299, 1
      %s301 = scalar_select %p298, %s299, %s300
      %p304 = pneg %p298
      %p305 = scmp.eq.s32.totalorder %s20, 1
      %p306 = por %p304, %p305
      %p307 = scmp.ne.s32.totalorder %s299, %s302
      %p308 = scmp.eq.s32.totalorder %s20, 0
      %p309 = por %p307, %p308
      %p310 = scmp.ne.s32.totalorder %s299, %s302
      %p311 = scmp.eq.s32.totalorder %s25, 1
      %p312 = por %p310, %p311
      %p313 = scmp.ne.s32.totalorder %s302, %s303
      %p314 = scmp.eq.s32.totalorder %s25, 0
      %p315 = por %p313, %p314
      %p316 = scmp.ne.s32.totalorder %s302, %s303
      %p317 = scmp.eq.s32.totalorder %s26, 1
      %p318 = por %p316, %p317
      %p320 = scmp.ne.s32.totalorder %s303, %s319
      %p321 = scmp.eq.s32.totalorder %s26, 0
      %p322 = por %p320, %p321
      %p323 = scmp.le.s32.totalorder 1, %s20
      %p324 = scmp.lt.s32.totalorder %s20, 3
      %p325 = pnand %p323, %p324
      %p326 = pneg %p325
      // Predicated region
      $region9: #{res_conv1d_forward.3} parent=5 // pred_check
        _
      $region10: #{res_conv1d_forward.3} parent=5 // pred_check_branch
        %328 = sbr.rel (%p325) target = $region12
      $region11: #{res_conv1d_forward.3} parent=5 // pred_region
        %s329 = ssub.s32 %s20, 1
        // Predicated region
        $region13: #{res_conv1d_forward.3} parent=11 // pred_check
          %p330 = pneg %p161
        $region14: #{res_conv1d_forward.3} parent=11 // pred_check_branch
          %332 = sbr.rel (%p330) target = $region16
        $region15: #{res_conv1d_forward.3} parent=11 // pred_region
          _
        $region16: #{res_conv1d_forward.3} parent=11 // pred_fallthru
          _
        // Predicated region
        $region17: #{res_conv1d_forward.3} parent=11 // pred_check
          %p333 = pneg %p182
        $region18: #{res_conv1d_forward.3} parent=11 // pred_check_branch
          %335 = sbr.rel (%p333) target = $region20
        $region19: #{res_conv1d_forward.3} parent=11 // pred_region
          _
        $region20: #{res_conv1d_forward.3} parent=11 // pred_fallthru
          _
        // Predicated region
        $region21: #{res_conv1d_forward.3} parent=11 // pred_check
          %p336 = pneg %p203
        $region22: #{res_conv1d_forward.3} parent=11 // pred_check_branch
          %338 = sbr.rel (%p336) target = $region24
        $region23: #{res_conv1d_forward.3} parent=11 // pred_region
          _
        $region24: #{res_conv1d_forward.3} parent=11 // pred_fallthru
          _
        // Predicated region
        $region25: #{res_conv1d_forward.3} parent=11 // pred_check
          %p339 = pneg %p224
        $region26: #{res_conv1d_forward.3} parent=11 // pred_check_branch
          %341 = sbr.rel (%p339) target = $region28
        $region27: #{res_conv1d_forward.3} parent=11 // pred_region
          _
        $region28: #{res_conv1d_forward.3} parent=11 // pred_fallthru
          _
        // Predicated region
        $region29: #{res_conv1d_forward.3} parent=11 // pred_check
          %p342 = pneg %p245
        $region30: #{res_conv1d_forward.3} parent=11 // pred_check_branch
          %344 = sbr.rel (%p342) target = $region32
        $region31: #{res_conv1d_forward.3} parent=11 // pred_region
          _
        $region32: #{res_conv1d_forward.3} parent=11 // pred_fallthru
          _
        // Predicated region
        $region33: #{res_conv1d_forward.3} parent=11 // pred_check
          %p345 = pneg %p266
        $region34: #{res_conv1d_forward.3} parent=11 // pred_check_branch
          %347 = sbr.rel (%p345) target = $region36
        $region35: #{res_conv1d_forward.3} parent=11 // pred_region
          _
        $region36: #{res_conv1d_forward.3} parent=11 // pred_fallthru
          _
        // Predicated region
        $region37: #{res_conv1d_forward.3} parent=11 // pred_check
          %p348 = pneg %p287
        $region38: #{res_conv1d_forward.3} parent=11 // pred_check_branch
          %350 = sbr.rel (%p348) target = $region40
        $region39: #{res_conv1d_forward.3} parent=11 // pred_region
          _
        $region40: #{res_conv1d_forward.3} parent=11 // pred_fallthru
          _
      $region12: #{res_conv1d_forward.3} parent=5 // pred_fallthru
        _
      %p351 = scmp.lt.s32.totalorder %s20, 2
      // Predicated region
      $region41: #{res_conv1d_forward.3} parent=5 // pred_check
        %p352 = pneg %p351
      $region42: #{res_conv1d_forward.3} parent=5 // pred_check_branch
        %354 = sbr.rel (%p352) target = $region44
      $region43: #{res_conv1d_forward.3} parent=5 // pred_region
        // Predicated region
        $region45: #{res_conv1d_forward.3} parent=43 // pred_check
          %p355 = pneg %p54
        $region46: #{res_conv1d_forward.3} parent=43 // pred_check_branch
          %357 = sbr.rel (%p355) target = $region48
        $region47: #{res_conv1d_forward.3} parent=43 // pred_region
          %p358 = scmp.lt.s32.totalorder %s27, 1
          %s359 = scalar_select %p358, %s27, 1
          %p360 = scmp.lt.s32.totalorder %s28, 0
          %s361 = scalar_select %p360, %s28, 0
          %s362 = sadd.s32 %s361, %s359
          %s363 = smul.addr %s362, 4
          %s364 = scalar_lea.vmem %s0, %s363
        $region48: #{res_conv1d_forward.3} parent=43 // pred_fallthru
          _
        // Predicated region
        $region49: #{res_conv1d_forward.3} parent=43 // pred_check
          %p365 = pneg %p82
        $region50: #{res_conv1d_forward.3} parent=43 // pred_check_branch
          %367 = sbr.rel (%p365) target = $region52
        $region51: #{res_conv1d_forward.3} parent=43 // pred_region
          %p368 = scmp.lt.s32.totalorder %s27, 1
          %s369 = scalar_select %p368, %s27, 1
          %p370 = scmp.lt.s32.totalorder %s28, 0
          %s371 = scalar_select %p370, %s28, 0
          %s372 = sadd.s32 %s371, %s369
          %s373 = smul.addr %s372, 2
          %s374 = scalar_lea.vmem %s1, %s373
        $region52: #{res_conv1d_forward.3} parent=43 // pred_fallthru
          _
        // Predicated region
        $region53: #{res_conv1d_forward.3} parent=43 // pred_check
          %p375 = pneg %p108
        $region54: #{res_conv1d_forward.3} parent=43 // pred_check_branch
          %377 = sbr.rel (%p375) target = $region56
        $region55: #{res_conv1d_forward.3} parent=43 // pred_region
          %p378 = scmp.lt.s32.totalorder %s27, 1
          %s379 = scalar_select %p378, %s27, 1
          %s380 = scalar_lea.vmem %s2, %s379
        $region56: #{res_conv1d_forward.3} parent=43 // pred_fallthru
          _
        // Predicated region
        $region57: #{res_conv1d_forward.3} parent=43 // pred_check
          %p381 = pneg %p134
        $region58: #{res_conv1d_forward.3} parent=43 // pred_check_branch
          %383 = sbr.rel (%p381) target = $region60
        $region59: #{res_conv1d_forward.3} parent=43 // pred_region
          %p384 = scmp.lt.s32.totalorder %s27, 1
          %s385 = scalar_select %p384, %s27, 1
          %s386 = scalar_lea.vmem %s3, %s385
        $region60: #{res_conv1d_forward.3} parent=43 // pred_fallthru
          _
      $region44: #{res_conv1d_forward.3} parent=5 // pred_fallthru
        _
      %p387 = scmp.le.s32.totalorder 1, %s20
      %p388 = scmp.lt.s32.totalorder %s20, 3
      %p389 = pnand %p387, %p388
      %p390 = pneg %p389
      // Predicated region
      $region61: #{res_conv1d_forward.3} parent=5 // pred_check
        _
      $region62: #{res_conv1d_forward.3} parent=5 // pred_check_branch
        %392 = sbr.rel (%p389) target = $region64
      $region63: #{res_conv1d_forward.3} parent=5 // pred_region
        %s393 = ssub.s32 %s20, 1
        %p394 = scmp.lt.s32.totalorder %s29, 1
        %s395 = scalar_select %p394, %s29, 1
        %p396 = scmp.lt.s32.totalorder %s30, 0
        %s397 = scalar_select %p396, %s30, 0
        %s398 = sadd.s32 %s397, %s395
        %s399 = smul.addr %s398, 4
        %s400 = scalar_lea.vmem %s0, %s399
        %p401 = pneg %p60
        %p402 = pneg %p57
        %p403 = scmp.lt.s32.totalorder %s29, 1
        %s404 = scalar_select %p403, %s29, 1
        %p405 = scmp.lt.s32.totalorder %s30, 0
        %s406 = scalar_select %p405, %s30, 0
        %s407 = sadd.s32 %s406, %s404
        %s408 = smul.addr %s407, 2
        %s409 = scalar_lea.vmem %s1, %s408
        %p410 = pneg %p88
        %p411 = pneg %p85
        %p412 = scmp.lt.s32.totalorder %s29, 1
        %s413 = scalar_select %p412, %s29, 1
        %s414 = scalar_lea.vmem %s2, %s413
        %p415 = pneg %p114
        %p416 = pneg %p111
        %p417 = scmp.lt.s32.totalorder %s29, 1
        %s418 = scalar_select %p417, %s29, 1
        %s419 = scalar_lea.vmem %s3, %s418
        %p420 = pneg %p140
        %p421 = pneg %p137
        %p422 = pneg %p161
        %p423 = pneg %p158
        %p424 = pneg %p182
        %p425 = pneg %p179
        %p426 = pneg %p203
        %p427 = pneg %p200
        %p428 = pneg %p224
        %p429 = pneg %p221
        %p430 = pneg %p245
        %p431 = pneg %p242
        %p432 = pneg %p266
        %p433 = pneg %p263
        %p434 = pneg %p287
        %p435 = pneg %p284
        %p436 = pneg %p315
        %p437 = pneg %p312
        %s438 = sand.u32 %s302, 1
        %s439 = scalar_lea.sflag [#allocation3], %s438
        %s440 = sand.u32 %s302, 1
        %s441 = smul.addr %s440, 4
        %s442 = scalar_lea.vmem [#allocation2], %s441
        %p443 = scmp.lt.s32.totalorder %s29, 1
        %s444 = scalar_select %p443, %s29, 1
        %p445 = scmp.lt.s32.totalorder %s30, 0
        %s446 = scalar_select %p445, %s30, 0
        %s447 = sadd.s32 %s446, %s444
        %s448 = smul.addr %s447, 4
        %s449 = scalar_lea.vmem %s0, %s448
        %p450 = scmp.lt.s32.totalorder %s29, 1
        %s451 = scalar_select %p450, %s29, 1
        %p452 = scmp.lt.s32.totalorder %s30, 0
        %s453 = scalar_select %p452, %s30, 0
        %s454 = sadd.s32 %s453, %s451
        %s455 = smul.addr %s454, 2
        %s456 = scalar_lea.vmem %s1, %s455
        %p457 = scmp.lt.s32.totalorder %s29, 1
        %s458 = scalar_select %p457, %s29, 1
        %s459 = scalar_lea.vmem %s2, %s458
        %p460 = scmp.lt.s32.totalorder %s29, 1
        %s461 = scalar_select %p460, %s29, 1
        %s462 = scalar_lea.vmem %s3, %s461
        %s463 = smul.u32 %s30, 4
        %v464 = vld [vmem:[%s449] sm:$0xf]
        %v465 = vld [vmem:[%s4] sm:$0x1]
        %v467 = vlaneseq
        %v468 = vshrl.u32 %v467, 7
        %v469 = vsub.s32 0, %v468
        %v470 = vrot.slane %v465, %v469
        %v472 = vmul.f32 %v464, %v470
        %v473 = vld [vmem:[%s5] sm:$0x1]
        %v475 = vlaneseq
        %v476 = vshrl.u32 %v475, 7
        %v477 = vsub.s32 0, %v476
        %v478 = vrot.slane %v473, %v477
        %v480 = vadd.f32 %v472, %v478
        %v481 = vmax.f32 %v480, 0.0
        %v482 = vld [vmem:[%s6] sm:$0xff]
        %v483 = vld [vmem:[%s6 + $0x8] sm:$0xff]
        %v484 = vld [vmem:[%s6 + $0x10] sm:$0xff]
        %v485 = vld [vmem:[%s6 + $0x18] sm:$0xff]
        %v486 = vld [vmem:[%s6 + $0x20] sm:$0xff]
        %v487 = vld [vmem:[%s6 + $0x28] sm:$0xff]
        %vm488 = vcmask 392192
        %v490 = vsel %vm488, %v481, 0
        %492 = vmatprep.subr.mxu0 0.0
        %493 = vmatpush1.msra.mxu0 0.0
        %494 = vmatprep.subr.mxu0 0.0
        %495 = vmatpush1.msra.mxu0 0.0
        %496 = vmatprep.subr.mxu0 0.0
        %497 = vmatpush1.msra.mxu0 0.0
        %498 = vmatprep.subr.mxu0 0.0
        %499 = vmatpush1.msra.mxu0 0.0
        %500 = vmatprep.subr.mxu0 0.0
        %501 = vmatpush1.msra.mxu0 0.0
        %502 = vmatprep.subr.mxu0 0.0
        %503 = vmatpush1.msra.mxu0 0.0
        %504 = vmatprep.subr.mxu0 0.0
        %505 = vmatpush1.msra.mxu0 0.0
        %506 = vmatprep.subr.mxu0 0.0
        %507 = vmatpush1.msra.mxu0 0.0
        %508 = vmatprep.subr.mxu0 0.0
        %509 = vmatpush1.msra.mxu0 0.0
        %510 = vmatprep.subr.mxu0 0.0
        %511 = vmatpush1.msra.mxu0 0.0
        %512 = vmatprep.subr.mxu0 0.0
        %513 = vmatpush1.msra.mxu0 %v487
        %514 = vmatprep.subr.mxu0 0.0
        %515 = vmatpush1.msra.mxu0 %v486
        %516 = vmatprep.subr.mxu0 0.0
        %517 = vmatpush1.msra.mxu0 %v485
        %518 = vmatprep.subr.mxu0 0.0
        %519 = vmatpush1.msra.mxu0 %v484
        %520 = vmatprep.subr.mxu0 0.0
        %521 = vmatpush1.msra.mxu0 %v483
        %522 = vmatprep.subr.mxu0 0.0
        %523 = vmatpush1.msra.mxu0 %v482
        %524 = vmatprep.subr.mxu0 0.0
        %525 = vmatpush2.msra.mxu0 0.0
        %526 = vmatprep.subr.mxu0 0.0
        %527 = vmatpush2.msra.mxu0 0.0
        %528 = vmatprep.subr.mxu0 0.0
        %529 = vmatpush2.msra.mxu0 0.0
        %530 = vmatprep.subr.mxu0 0.0
        %531 = vmatpush2.msra.mxu0 0.0
        %532 = vmatprep.subr.mxu0 0.0
        %533 = vmatpush2.msra.mxu0 0.0
        %534 = vmatprep.subr.mxu0 0.0
        %535 = vmatpush2.msra.mxu0 0.0
        %536 = vmatprep.subr.mxu0 0.0
        %537 = vmatpush2.msra.mxu0 0.0
        %538 = vmatprep.subr.mxu0 0.0
        %539 = vmatpush2.msra.mxu0 0.0
        %540 = vmatprep.subr.mxu0 0.0
        %541 = vmatpush2.msra.mxu0 0.0
        %542 = vmatprep.subr.mxu0 0.0
        %543 = vmatpush2.msra.mxu0 0.0
        %544 = vmatprep.subr.mxu0 0.0
        %545 = vmatpush2.msra.mxu0 0.0
        %546 = vmatprep.subr.mxu0 0.0
        %547 = vmatpush2.msra.mxu0 0.0
        %548 = vmatprep.subr.mxu0 0.0
        %549 = vmatpush2.msra.mxu0 0.0
        %550 = vmatprep.subr.mxu0 0.0
        %551 = vmatpush2.msra.mxu0 0.0
        %552 = vmatprep.subr.mxu0 0.0
        %553 = vmatpush2.msra.mxu0 0.0
        %554 = vmatprep.subr.mxu0 0.0
        %555 = vmatpush2.msra.mxu0 0.0
        %556 = vmatprep.mubr.f32.mxu0 0.0
        %557 = vmatmul.mubr.f32.gmra.mxu0 %v490
        %v558 = vpop.f32.mrf.mxu0
        %v559 = vadd.f32 0.0, %v558
        %v560 = vpop.f32.mrf.mxu0
        %561 = vdwg.mxu0
        %v562 = vld [vmem:[%s7] sm:$0x1]
        %v564 = vlaneseq
        %v565 = vshrl.u32 %v564, 7
        %v566 = vsub.s32 0, %v565
        %v567 = vrot.slane %v562, %v566
        %v569 = vmul.f32 %v559, %v567
        %v570 = vld [vmem:[%s8] sm:$0x1]
        %v572 = vlaneseq
        %v573 = vshrl.u32 %v572, 7
        %v574 = vsub.s32 0, %v573
        %v575 = vrot.slane %v570, %v574
        %v577 = vadd.f32 %v569, %v575
        %v578 = vmax.f32 %v577, 0.0
        %v579 = vld [vmem:[%s456] sm:$0x3]
        %v580 = vmul.f32 %v579, %v470
        %v581 = vadd.f32 %v580, %v478
        %v582 = vmax.f32 %v581, 0.0
        %v584 = vsel %vm488, %v582, 0
        %586 = vmatprep.subr.mxu0 0.0
        %587 = vmatpush1.msra.mxu0 0.0
        %588 = vmatprep.subr.mxu0 0.0
        %589 = vmatpush1.msra.mxu0 0.0
        %590 = vmatprep.subr.mxu0 0.0
        %591 = vmatpush1.msra.mxu0 0.0
        %592 = vmatprep.subr.mxu0 0.0
        %593 = vmatpush1.msra.mxu0 0.0
        %594 = vmatprep.subr.mxu0 0.0
        %595 = vmatpush1.msra.mxu0 0.0
        %596 = vmatprep.subr.mxu0 0.0
        %597 = vmatpush1.msra.mxu0 0.0
        %598 = vmatprep.subr.mxu0 0.0
        %599 = vmatpush1.msra.mxu0 0.0
        %600 = vmatprep.subr.mxu0 0.0
        %601 = vmatpush1.msra.mxu0 0.0
        %602 = vmatprep.subr.mxu0 0.0
        %603 = vmatpush1.msra.mxu0 0.0
        %604 = vmatprep.subr.mxu0 0.0
        %605 = vmatpush1.msra.mxu0 0.0
        %606 = vmatprep.subr.mxu0 0.0
        %607 = vmatpush1.msra.mxu0 %v487
        %608 = vmatprep.subr.mxu0 0.0
        %609 = vmatpush1.msra.mxu0 %v486
        %610 = vmatprep.subr.mxu0 0.0
        %611 = vmatpush1.msra.mxu0 %v485
        %612 = vmatprep.subr.mxu0 0.0
        %613 = vmatpush1.msra.mxu0 %v484
        %614 = vmatprep.subr.mxu0 0.0
        %615 = vmatpush1.msra.mxu0 %v483
        %616 = vmatprep.subr.mxu0 0.0
        %617 = vmatpush1.msra.mxu0 %v482
        %618 = vmatprep.subr.mxu0 0.0
        %619 = vmatpush2.msra.mxu0 0.0
        %620 = vmatprep.subr.mxu0 0.0
        %621 = vmatpush2.msra.mxu0 0.0
        %622 = vmatprep.subr.mxu0 0.0
        %623 = vmatpush2.msra.mxu0 0.0
        %624 = vmatprep.subr.mxu0 0.0
        %625 = vmatpush2.msra.mxu0 0.0
        %626 = vmatprep.subr.mxu0 0.0
        %627 = vmatpush2.msra.mxu0 0.0
        %628 = vmatprep.subr.mxu0 0.0
        %629 = vmatpush2.msra.mxu0 0.0
        %630 = vmatprep.subr.mxu0 0.0
        %631 = vmatpush2.msra.mxu0 0.0
        %632 = vmatprep.subr.mxu0 0.0
        %633 = vmatpush2.msra.mxu0 0.0
        %634 = vmatprep.subr.mxu0 0.0
        %635 = vmatpush2.msra.mxu0 0.0
        %636 = vmatprep.subr.mxu0 0.0
        %637 = vmatpush2.msra.mxu0 0.0
        %638 = vmatprep.subr.mxu0 0.0
        %639 = vmatpush2.msra.mxu0 0.0
        %640 = vmatprep.subr.mxu0 0.0
        %641 = vmatpush2.msra.mxu0 0.0
        %642 = vmatprep.subr.mxu0 0.0
        %643 = vmatpush2.msra.mxu0 0.0
        %644 = vmatprep.subr.mxu0 0.0
        %645 = vmatpush2.msra.mxu0 0.0
        %646 = vmatprep.subr.mxu0 0.0
        %647 = vmatpush2.msra.mxu0 0.0
        %648 = vmatprep.subr.mxu0 0.0
        %649 = vmatpush2.msra.mxu0 0.0
        %650 = vmatprep.mubr.f32.mxu0 0.0
        %651 = vmatmul.mubr.f32.gmra.mxu0 %v584
        %v652 = vpop.f32.mrf.mxu0
        %v653 = vadd.f32 0.0, %v652
        %v654 = vpop.f32.mrf.mxu0
        %655 = vdwg.mxu0
        %v656 = vmul.f32 %v653, %v567
        %v657 = vadd.f32 %v656, %v575
        %v658 = vmax.f32 %v657, 0.0
        %s659 = ssub.s32 %s463, 1
        %p660 = scmp.ge.s32.totalorder %s659, 0
        %s661 = scalar_select %p660, 1, 0
        %v662 = vstv %s661
        %vm663 = vcmp.eq.s32.totalorder %v662, 1
        %v664 = vsel %vm663, %v658, 0.0
        %s665 = sadd.s32 %s463, 4
        %s666 = smul.u32 %s665, 2
        %p667 = scmp.le.s32.totalorder %s666, 7
        %s668 = scalar_select %p667, 1, 0
        %v669 = vstv %s668
        %vm670 = vcmp.eq.s32.totalorder %v669, 1
        %v671 = vsel %vm670, %v658, 0.0
        %v673 = vrot.slane %v578, 7
        %vm675 = vcmask 1040384
        %v676 = vsel %vm675, %v664, %v673
        %v677 = vrot.slane %v578, 1
        %v680 = vrot.slane %v671, 6
        %vm682 = vcmask 1042432
        %v683 = vsel %vm682, %v677, %v680
        %684 = vrot.lane.b32.xlu0 %v578, 32
        %v685 = vpop.permute.xlu0 %684
        %688 = vrot.lane.b32.xlu0 %v683, 64
        %v689 = vpop.permute.xlu0 %688
        %vm691 = vcmask 261120
        %v692 = vsel %vm691, %v676, %v685
        %vm693 = vcmask 523264
        %v694 = vsel %vm693, %v692, %v689
        %v695 = vld [vmem:[%s9] sm:$0xff]
        %v696 = vld [vmem:[%s9 + $0x8] sm:$0xff]
        %v697 = vld [vmem:[%s9 + $0x10] sm:$0xff]
        %v698 = vld [vmem:[%s9 + $0x18] sm:$0xff]
        %v699 = vld [vmem:[%s9 + $0x20] sm:$0xff]
        %v700 = vld [vmem:[%s9 + $0x28] sm:$0xff]
        %v701 = vld [vmem:[%s9 + $0x30] sm:$0xff]
        %v702 = vld [vmem:[%s9 + $0x38] sm:$0xff]
        %v703 = vld [vmem:[%s9 + $0x40] sm:$0xff]
        %v704 = vld [vmem:[%s9 + $0x48] sm:$0xff]
        %v705 = vld [vmem:[%s9 + $0x50] sm:$0xff]
        %v706 = vld [vmem:[%s9 + $0x58] sm:$0xff]
        %vm707 = vcmask 785408
        %v709 = vsel %vm707, %v694, 0
        %711 = vmatprep.subr.mxu0 0.0
        %712 = vmatpush1.msra.mxu0 0.0
        %713 = vmatprep.subr.mxu0 0.0
        %714 = vmatpush1.msra.mxu0 0.0
        %715 = vmatprep.subr.mxu0 0.0
        %716 = vmatpush1.msra.mxu0 0.0
        %717 = vmatprep.subr.mxu0 0.0
        %718 = vmatpush1.msra.mxu0 0.0
        %719 = vmatprep.subr.mxu0 0.0
        %720 = vmatpush1.msra.mxu0 %v706
        %721 = vmatprep.subr.mxu0 0.0
        %722 = vmatpush1.msra.mxu0 %v705
        %723 = vmatprep.subr.mxu0 0.0
        %724 = vmatpush1.msra.mxu0 %v704
        %725 = vmatprep.subr.mxu0 0.0
        %726 = vmatpush1.msra.mxu0 %v703
        %727 = vmatprep.subr.mxu0 0.0
        %728 = vmatpush1.msra.mxu0 %v702
        %729 = vmatprep.subr.mxu0 0.0
        %730 = vmatpush1.msra.mxu0 %v701
        %731 = vmatprep.subr.mxu0 0.0
        %732 = vmatpush1.msra.mxu0 %v700
        %733 = vmatprep.subr.mxu0 0.0
        %734 = vmatpush1.msra.mxu0 %v699
        %735 = vmatprep.subr.mxu0 0.0
        %736 = vmatpush1.msra.mxu0 %v698
        %737 = vmatprep.subr.mxu0 0.0
        %738 = vmatpush1.msra.mxu0 %v697
        %739 = vmatprep.subr.mxu0 0.0
        %740 = vmatpush1.msra.mxu0 %v696
        %741 = vmatprep.subr.mxu0 0.0
        %742 = vmatpush1.msra.mxu0 %v695
        %743 = vmatprep.subr.mxu0 0.0
        %744 = vmatpush2.msra.mxu0 0.0
        %745 = vmatprep.subr.mxu0 0.0
        %746 = vmatpush2.msra.mxu0 0.0
        %747 = vmatprep.subr.mxu0 0.0
        %748 = vmatpush2.msra.mxu0 0.0
        %749 = vmatprep.subr.mxu0 0.0
        %750 = vmatpush2.msra.mxu0 0.0
        %751 = vmatprep.subr.mxu0 0.0
        %752 = vmatpush2.msra.mxu0 0.0
        %753 = vmatprep.subr.mxu0 0.0
        %754 = vmatpush2.msra.mxu0 0.0
        %755 = vmatprep.subr.mxu0 0.0
        %756 = vmatpush2.msra.mxu0 0.0
        %757 = vmatprep.subr.mxu0 0.0
        %758 = vmatpush2.msra.mxu0 0.0
        %759 = vmatprep.subr.mxu0 0.0
        %760 = vmatpush2.msra.mxu0 0.0
        %761 = vmatprep.subr.mxu0 0.0
        %762 = vmatpush2.msra.mxu0 0.0
        %763 = vmatprep.subr.mxu0 0.0
        %764 = vmatpush2.msra.mxu0 0.0
        %765 = vmatprep.subr.mxu0 0.0
        %766 = vmatpush2.msra.mxu0 0.0
        %767 = vmatprep.subr.mxu0 0.0
        %768 = vmatpush2.msra.mxu0 0.0
        %769 = vmatprep.subr.mxu0 0.0
        %770 = vmatpush2.msra.mxu0 0.0
        %771 = vmatprep.subr.mxu0 0.0
        %772 = vmatpush2.msra.mxu0 0.0
        %773 = vmatprep.subr.mxu0 0.0
        %774 = vmatpush2.msra.mxu0 0.0
        %775 = vmatprep.mubr.f32.mxu0 0.0
        %776 = vmatmul.mubr.f32.gmra.mxu0 %v709
        %v777 = vpop.f32.mrf.mxu0
        %v778 = vadd.f32 0.0, %v777
        %v779 = vpop.f32.mrf.mxu0
        %780 = vdwg.mxu0
        %v781 = vld [vmem:[%s10] sm:$0xff]
        %v782 = vld [vmem:[%s10 + $0x8] sm:$0xff]
        %v783 = vld [vmem:[%s10 + $0x10] sm:$0xff]
        %v784 = vld [vmem:[%s10 + $0x18] sm:$0xff]
        %v785 = vld [vmem:[%s10 + $0x20] sm:$0xff]
        %v786 = vld [vmem:[%s10 + $0x28] sm:$0xff]
        %v788 = vsel %vm488, %v464, 0
        %790 = vmatprep.subr.mxu0 0.0
        %791 = vmatpush1.msra.mxu0 0.0
        %792 = vmatprep.subr.mxu0 0.0
        %793 = vmatpush1.msra.mxu0 0.0
        %794 = vmatprep.subr.mxu0 0.0
        %795 = vmatpush1.msra.mxu0 0.0
        %796 = vmatprep.subr.mxu0 0.0
        %797 = vmatpush1.msra.mxu0 0.0
        %798 = vmatprep.subr.mxu0 0.0
        %799 = vmatpush1.msra.mxu0 0.0
        %800 = vmatprep.subr.mxu0 0.0
        %801 = vmatpush1.msra.mxu0 0.0
        %802 = vmatprep.subr.mxu0 0.0
        %803 = vmatpush1.msra.mxu0 0.0
        %804 = vmatprep.subr.mxu0 0.0
        %805 = vmatpush1.msra.mxu0 0.0
        %806 = vmatprep.subr.mxu0 0.0
        %807 = vmatpush1.msra.mxu0 0.0
        %808 = vmatprep.subr.mxu0 0.0
        %809 = vmatpush1.msra.mxu0 0.0
        %810 = vmatprep.subr.mxu0 0.0
        %811 = vmatpush1.msra.mxu0 %v786
        %812 = vmatprep.subr.mxu0 0.0
        %813 = vmatpush1.msra.mxu0 %v785
        %814 = vmatprep.subr.mxu0 0.0
        %815 = vmatpush1.msra.mxu0 %v784
        %816 = vmatprep.subr.mxu0 0.0
        %817 = vmatpush1.msra.mxu0 %v783
        %818 = vmatprep.subr.mxu0 0.0
        %819 = vmatpush1.msra.mxu0 %v782
        %820 = vmatprep.subr.mxu0 0.0
        %821 = vmatpush1.msra.mxu0 %v781
        %822 = vmatprep.subr.mxu0 0.0
        %823 = vmatpush2.msra.mxu0 0.0
        %824 = vmatprep.subr.mxu0 0.0
        %825 = vmatpush2.msra.mxu0 0.0
        %826 = vmatprep.subr.mxu0 0.0
        %827 = vmatpush2.msra.mxu0 0.0
        %828 = vmatprep.subr.mxu0 0.0
        %829 = vmatpush2.msra.mxu0 0.0
        %830 = vmatprep.subr.mxu0 0.0
        %831 = vmatpush2.msra.mxu0 0.0
        %832 = vmatprep.subr.mxu0 0.0
        %833 = vmatpush2.msra.mxu0 0.0
        %834 = vmatprep.subr.mxu0 0.0
        %835 = vmatpush2.msra.mxu0 0.0
        %836 = vmatprep.subr.mxu0 0.0
        %837 = vmatpush2.msra.mxu0 0.0
        %838 = vmatprep.subr.mxu0 0.0
        %839 = vmatpush2.msra.mxu0 0.0
        %840 = vmatprep.subr.mxu0 0.0
        %841 = vmatpush2.msra.mxu0 0.0
        %842 = vmatprep.subr.mxu0 0.0
        %843 = vmatpush2.msra.mxu0 0.0
        %844 = vmatprep.subr.mxu0 0.0
        %845 = vmatpush2.msra.mxu0 0.0
        %846 = vmatprep.subr.mxu0 0.0
        %847 = vmatpush2.msra.mxu0 0.0
        %848 = vmatprep.subr.mxu0 0.0
        %849 = vmatpush2.msra.mxu0 0.0
        %850 = vmatprep.subr.mxu0 0.0
        %851 = vmatpush2.msra.mxu0 0.0
        %852 = vmatprep.subr.mxu0 0.0
        %853 = vmatpush2.msra.mxu0 0.0
        %854 = vmatprep.mubr.f32.mxu0 0.0
        %855 = vmatmul.mubr.f32.gmra.mxu0 %v788
        %v856 = vpop.f32.mrf.mxu0
        %v857 = vadd.f32 0.0, %v856
        %v858 = vpop.f32.mrf.mxu0
        %859 = vdwg.mxu0
        %v860 = vld [vmem:[%s459] sm:$0x1]
        %v862 = vlaneseq
        %v863 = vshrl.u32 %v862, 7
        %v864 = vsub.s32 0, %v863
        %v865 = vrot.slane %v860, %v864
        %v867 = vmul.f32 %v865, %v778
        %v868 = vadd.f32 %v867, %v857
        %v869 = vld [vmem:[%s462] sm:$0x1]
        %v871 = vlaneseq
        %v872 = vshrl.u32 %v871, 7
        %v873 = vsub.s32 0, %v872
        %v874 = vrot.slane %v869, %v873
        %v876 = vadd.f32 %v868, %v874
        %v877 = vmax.f32 %v876, 0.0
        %vm878 = vcmask 257024
        %879 = vst.msk [vmem:[%s442] sm:$0xf] %vm878, %v877
        %s880 = sand.u32 %s302, 1
        %s881 = scalar_lea.sflag [#allocation3], %s880
        %s882 = sand.u32 %s302, 1
        %s883 = smul.addr %s882, 4
        %s884 = scalar_lea.vmem [#allocation2], %s883
        // Predicated region
        $region65: #{res_conv1d_forward.3} parent=63 // pred_check
          %p885 = pneg %p312
        $region66: #{res_conv1d_forward.3} parent=63 // pred_check_branch
          %887 = sbr.rel (%p885) target = $region68
        $region67: #{res_conv1d_forward.3} parent=63 // pred_region
          %s889 = ssub.s32 64, 64
          %890 = vsyncadd %s881, %s889
          %s891 = sadd.s32 %s30, %s29
          %s892 = smul.addr %s891, 64
          %s893 = scalar_lea.hbm %s11, %s892
          %s895 = sshll.u32 %s884, 4
          %s896 = int_to_ptr.vmem [resolvable:$true] %s895
          %898 = dma.vmem_to_hbm [thread:$0]  %s896, 64, %s893, %s881
        $region68: #{res_conv1d_forward.3} parent=63 // pred_fallthru
          _
      $region64: #{res_conv1d_forward.3} parent=5 // pred_fallthru
        _
      %p899 = scmp.le.s32.totalorder 2, %s20
      // Predicated region
      $region69: #{res_conv1d_forward.3} parent=5 // pred_check
        %p900 = pneg %p899
      $region70: #{res_conv1d_forward.3} parent=5 // pred_check_branch
        %902 = sbr.rel (%p900) target = $region72
      $region71: #{res_conv1d_forward.3} parent=5 // pred_region
        %s903 = ssub.s32 %s20, 2
        // Predicated region
        $region73: #{res_conv1d_forward.3} parent=71 // pred_check
          %p904 = pneg %p318
        $region74: #{res_conv1d_forward.3} parent=71 // pred_check_branch
          %906 = sbr.rel (%p904) target = $region76
        $region75: #{res_conv1d_forward.3} parent=71 // pred_region
          %s907 = sand.u32 %s303, 1
          %s908 = scalar_lea.sflag [#allocation3], %s907
          %s909 = sand.u32 %s303, 1
          %s910 = smul.addr %s909, 4
          %s911 = scalar_lea.vmem [#allocation2], %s910
          %912 = dma.done %s908, 64
        $region76: #{res_conv1d_forward.3} parent=71 // pred_fallthru
          _
      $region72: #{res_conv1d_forward.3} parent=5 // pred_fallthru
        _
    $region6: #{res_conv1d_forward.3} parent=1 // loop_footer
      %s24 = sadd.s32 1, %s20
    $region7: #{res_conv1d_forward.3} parent=1 // loop_footer_branch
      %19 = sbr.rel target = $region3
    $region8: #{res_conv1d_forward.3} parent=1 // loop_exit
      _
    %913 = vsyncpa [#allocation3], 1
    %s914 = scalar_lea.sflag [#allocation3], 1
    %915 = vsyncpa %s914, 1

</llo_original>
